<compile_context>
chip_gen: v7x
topology: tpu7x:2x2x1
jax: 0.10.0
libtpu: 0.0.40
codegen_flags: <defaults>
</compile_context>

<pallas_src>
import jax
import jax.numpy as jnp
from jax.experimental import pallas as pl
from jax.experimental.pallas import tpu as pltpu


# ----------------------------------------------------------------------------
# Weight-slab layout (shared by prepare_params and the forward pass)
# ----------------------------------------------------------------------------
def _r16(n):
    return ((n + 15) // 16) * 16


def _slab_layout(in_dim, h, ret):
    """Row offsets inside the packed [rows, 4*h] bf16 weight slab.
    All section starts are multiples of 16 (bf16 sublane-pack alignment)."""
    off_ih = 0
    off_hh = off_ih + _r16(in_dim)          # W_ih^T  [in_dim, 4h]
    off_misc = off_hh + _r16(h)             # row off_misc: b_ih + b_hh
    off_ctrl = off_misc + 16                # W_ctrl^T padded to 4h lanes
    off_wm = off_ctrl + _r16(in_dim)        # W_match rows [hu | ret_us | hpu]
    rows = off_wm + _r16(in_dim + h + ret)
    return off_ih, off_hh, off_misc, off_ctrl, off_wm, rows


# ----------------------------------------------------------------------------
# One-time parameter preparation (OFF the per-call path)
# ----------------------------------------------------------------------------
def prepare_params(raw):
    f32, bf16 = jnp.float32, jnp.bfloat16
    in_dim = raw["p_lstm_w_ih"].shape[1]
    h = raw["p_lstm_w_hh"].shape[1]
    ret_dim = raw["retrieved"].shape[1]
    gates = 4 * h
    assert gates == 128, "weight slab layout assumes 4*out_dim == 128 lanes"

    _, off_hh, off_misc, off_ctrl, off_wm, rows = _slab_layout(in_dim, h, ret_dim)

    w = jnp.zeros((rows, gates), f32)
    w = w.at[0:in_dim, :].set(raw["p_lstm_w_ih"].T)                    # [in,4h]
    w = w.at[off_hh:off_hh + h, :].set(raw["p_lstm_w_hh"].T)           # [h,4h]
    w = w.at[off_misc, :].set(raw["p_lstm_b_ih"] + raw["p_lstm_b_hh"])  # bias
    w = w.at[off_ctrl:off_ctrl + in_dim, :h].set(raw["p_control_w"].T)  # [in,h]
    # RawBIM weight rows permuted to [hu | ret_us | hpu] so the adjacent
    # hu|ret_us lanes of the act slab share a single matmul; lanes >= r_dim
    # stay zero (tmp padding lanes come out exactly 0).
    wm = raw["match_w"]                                  # [in+h+ret, in+ret]
    wm_reord = jnp.concatenate([wm[:in_dim], wm[in_dim + h:], wm[in_dim:in_dim + h]], 0)
    w = w.at[off_wm:off_wm + in_dim + h + ret_dim, :in_dim + ret_dim].set(wm_reord)

    emb = raw["embedding"].astype(f32)
    return {
        "emb_f32": emb,
        "emb_bf16": emb.astype(bf16),        # bf16 table for the path gather
        "ret": raw["retrieved"].astype(f32),
        "h0": raw["h0"].astype(f32),
        "c0": raw["c0"].astype(f32),
        "bm": raw["match_b"].astype(f32),    # (1,) bilinear bias (kept exact, f32)
        "w_slab": w.astype(bf16),            # one bf16 slab, DMA'd once per call
    }


# ----------------------------------------------------------------------------
# Full forward (mode='rp', matching_method='BIM') — single pallas_call
# ----------------------------------------------------------------------------
def expan_match_sequence_forward(prep, q, us, paths, lens):
    f32, bf16 = jnp.float32, jnp.bfloat16
    emb, ret = prep["emb_f32"], prep["ret"]

    B, L = paths.shape
    in_dim = emb.shape[1]
    ret_dim = ret.shape[1]
    h_dim = prep["h0"].shape[1]
    gates = 4 * h_dim
    dq = in_dim + ret_dim                    # r_dim + retrieved dim (qf width)
    nur = in_dim + ret_dim                   # [hu | ret_us] lane width
    _, off_hh, off_misc, off_ctrl, off_wm, w_rows = _slab_layout(in_dim, h_dim, ret_dim)
    assert prep["h0"].shape[0] == B, "h0/c0 were prepared for a different batch size"

    # --- per-call glue (gathers + one concat only) ---------------------------
    # Path embeddings gathered time-major directly: [L, B, in_dim] bf16.
    x = prep["emb_bf16"][paths.T]

    # Activation slab [B, nur + dq + 2h + 2] f32:
    #   hu | ret_us | qf(=emb[q]|ret[q]) | h0 | c0 | lens | match_bias
    a_qf = nur
    a_h0 = a_qf + dq
    a_c0 = a_h0 + h_dim
    a_len = a_c0 + h_dim
    a_bm = a_len + 1
    act_lanes = a_bm + 1
    act = jnp.concatenate(
        [emb[us], ret[us], emb[q], ret[q], prep["h0"], prep["c0"],
         lens.astype(f32).reshape(B, 1),
         jnp.broadcast_to(prep["bm"].reshape(1, 1), (B, 1))], axis=1)

    # --- batch blocking ------------------------------------------------------
    # One block per grid step; block = min(B,128) rows so each MXU op has a
    # large M.  "parallel" lets v7x spread blocks over both TensorCores.
    bb = B if B <= 128 else 128
    assert B % bb == 0 and bb % 8 == 0
    grid = (B // bb,)

    # --- fused kernel: p_control + LSTM + masked temporal max + RawBIM -------
    def kernel(x_ref, act_ref, w_ref, out_ref):
        # Weight slab slices (static, section starts are 16-row aligned).
        w_ih = w_ref[0:in_dim, :]                               # [in, 4h] bf16
        w_hh = w_ref[off_hh:off_hh + h_dim, :]                  # [h,  4h] bf16
        bias = w_ref[off_misc:off_misc + 1, :].astype(f32)      # [1,  4h]
        w_ctrl = w_ref[off_ctrl:off_ctrl + in_dim, :]           # [in, 4h] (lanes>=h zero)
        wm_ur = w_ref[off_wm:off_wm + nur, :]                   # rows for [hu|ret_us]
        wm_hp = w_ref[off_wm + nur:off_wm + nur + h_dim, :]     # rows for hpu

        a = act_ref[...]                                        # [bb, act_lanes] f32
        h = a[:, a_h0:a_h0 + h_dim]
        c = a[:, a_c0:a_c0 + h_dim]
        lens_col = a[:, a_len:a_len + 1]                        # [bb, 1]
        bm_col = a[:, a_bm:a_bm + 1]                            # [bb, 1]

        xv = x_ref[...]                                         # [L, bb, in] bf16

        # p_control: ReLU(p[:,0,:] @ W_ctrl^T); ctrl >= 0.
        ctrl = jnp.maximum(
            jnp.dot(xv[0], w_ctrl, preferred_element_type=f32), 0.0)[:, :h_dim]

        # Hoisted LSTM input projection: ONE [L*bb, in] @ [in, 4h] bf16 matmul.
        xg_all = (jnp.dot(xv.reshape(L * bb, in_dim), w_ih,
                          preferred_element_type=f32) + bias).reshape(L, bb, gates)

        # Validity mask for all L steps computed ONCE (no per-step compare /
        # broadcast inside the unrolled recurrence).
        step_ids = jax.lax.broadcasted_iota(jnp.int32, (L, bb, h_dim), 0).astype(f32)
        m_all = (step_ids < lens_col[None, :, :]).astype(f32)   # [L, bb, h]

        acc = jnp.full((bb, h_dim), -jnp.inf, dtype=f32)
        for t in range(L):   # static unroll; per step: one small bf16 matmul + VPU/EUP
            g = xg_all[t] + jnp.dot(h.astype(bf16), w_hh,
                                    preferred_element_type=f32)  # [bb, 4h]
            sig = jax.nn.sigmoid(g)                 # one full-width sigmoid (i,f,_,o)
            i_g = sig[:, 0 * h_dim:1 * h_dim]
            f_g = sig[:, 1 * h_dim:2 * h_dim]
            o_g = sig[:, 3 * h_dim:4 * h_dim]
            g_g = jnp.tanh(g[:, 2 * h_dim:3 * h_dim])
            c = f_g * c + i_g * g_g
            h = o_g * jnp.tanh(c)
            # No h/c freeze: only the masked max is consumed downstream, and all
            # later steps of a finished row are masked too.  Padded steps add 0
            # (matches pad_packed_sequence zero padding under the max).
            acc = jnp.maximum(acc, h * m_all[t])

        hpu = ctrl * acc                                         # [bb, h]

        # RawBIM bilinear match, 2 dots: s = [hu|ret_us]@W_a + hpu@W_b, then ·qf + b.
        tmp = (jnp.dot(a[:, 0:nur].astype(bf16), wm_ur, preferred_element_type=f32)
               + jnp.dot(hpu.astype(bf16), wm_hp, preferred_element_type=f32))
        score = jnp.sum(tmp[:, :dq] * a[:, a_qf:a_qf + dq], axis=-1, keepdims=True)
        out_ref[...] = score + bm_col

    return pl.pallas_call(
        kernel,
        out_shape=jax.ShapeDtypeStruct((B, 1), jnp.float32),
        grid=grid,
        in_specs=[
            pl.BlockSpec((L, bb, in_dim), lambda b: (0, b, 0)),   # path embeddings
            pl.BlockSpec((bb, act_lanes), lambda b: (b, 0)),      # activation slab
            pl.BlockSpec((w_rows, gates), lambda b: (0, 0)),      # weight slab (resident)
        ],
        out_specs=pl.BlockSpec((bb, 1), lambda b: (b, 0)),
        compiler_params=pltpu.CompilerParams(
            dimension_semantics=("parallel",)),
        # Footprint is ~100 KiB; if B/L are scaled up, re-derive bb against the
        # 64 MiB v7x VMEM and set vmem_limit_bytes explicitly.
    )(x, act, prep["w_slab"])


# ----------------------------------------------------------------------------
# Deterministic parameter / input construction and test
# ----------------------------------------------------------------------------
if __name__ == "__main__":
    B, L = 16, 8                # batch, path length (small but > previous B=8)
    V = 64                      # vocab size
    IN_DIM = 32                 # options['in_dim']
    OUT_DIM = 32                # options['out_dim'] (LSTM hidden)
    RET_DIM = 32                # retrieved tensor dim
    L_DIM = IN_DIM + OUT_DIM    # mode 'rp'
    R_DIM = IN_DIM

    key = jax.random.PRNGKey(0)
    keys = jax.random.split(key, 12)

    def nrm(k, shape, scale=0.1):
        return (scale * jax.random.normal(k, shape)).astype(jnp.float32)

    raw_params = {
        "embedding":   nrm(keys[0], (V, IN_DIM), 1.0),
        "retrieved":   nrm(keys[1], (V, RET_DIM), 1.0),
        "p_lstm_w_ih": nrm(keys[2], (4 * OUT_DIM, IN_DIM)),
        "p_lstm_w_hh": nrm(keys[3], (4 * OUT_DIM, OUT_DIM)),
        "p_lstm_b_ih": nrm(keys[4], (4 * OUT_DIM,)),
        "p_lstm_b_hh": nrm(keys[5], (4 * OUT_DIM,)),
        "p_control_w": nrm(keys[6], (OUT_DIM, IN_DIM)),
        # deterministic stand-in for torch.randn init_hidden
        "h0":          nrm(keys[7], (B, OUT_DIM), 1.0),
        "c0":          nrm(keys[8], (B, OUT_DIM), 1.0),
        # match W sized for the post-retrieved-concat dims (see module forward)
        "match_w":     nrm(keys[9], (L_DIM + RET_DIM, R_DIM + RET_DIM)),
        "match_b":     nrm(keys[10], (1,)),
    }

    # One-time packing: transposes, bf16 casts, slab assembly (NOT per forward).
    prep = prepare_params(raw_params)

    q = jax.random.randint(keys[11], (B,), 0, V, dtype=jnp.int32)
    us = jax.random.randint(jax.random.fold_in(key, 1), (B,), 0, V, dtype=jnp.int32)
    paths = jax.random.randint(jax.random.fold_in(key, 2), (B, L), 0, V, dtype=jnp.int32)
    lens = jnp.array([8, 5, 3, 8, 6, 2, 7, 4, 8, 1, 6, 4, 8, 2, 5, 7],
                     dtype=jnp.int32)       # max == L, all >= 1

    fwd = jax.jit(expan_match_sequence_forward)
    scores = jax.block_until_ready(fwd(prep, q, us, paths, lens))
    assert scores.shape == (B, 1) and scores.dtype == jnp.float32
    assert bool(jnp.all(jnp.isfinite(scores)))
    print("KERNEL_OK")
</pallas_src>

<mosaic_0001>
module attributes {stable_mosaic.version = 11 : i64} {
  func.func @kernel(%arg0: i32, %arg1: memref<8x16x32xbf16, #tpu.memory_space<vmem>>, %arg2: memref<16x194xf32, #tpu.memory_space<vmem>>, %arg3: memref<208x128xbf16, #tpu.memory_space<vmem>>, %arg4: memref<16x1xf32, #tpu.memory_space<vmem>>) attributes {dimension_semantics = [#tpu.dimension_semantics<parallel>], iteration_bounds = array<i64: 1>, scalar_prefetch = 0 : i64, scratch_operands = 0 : i64, tpu.core_type = #tpu.core_type<tc>, window_params = [{transform_indices = @transform_0, window_bounds = array<i64: 8, 16, 32>}, {transform_indices = @transform_1, window_bounds = array<i64: 16, 194>}, {pipeline_mode = #tpu.pipeline_mode<synchronous>, transform_indices = @transform_2, window_bounds = array<i64: 208, 128>}, {transform_indices = @transform_3, window_bounds = array<i64: 16, 1>}]} {
    %c0 = arith.constant 0 : index
    %c0_0 = arith.constant 0 : index
    %0 = vector.load %arg3[%c0, %c0_0] : memref<208x128xbf16, #tpu.memory_space<vmem>>, vector<32x128xbf16>
    %c32 = arith.constant 32 : index
    %c0_1 = arith.constant 0 : index
    %1 = vector.load %arg3[%c32, %c0_1] : memref<208x128xbf16, #tpu.memory_space<vmem>>, vector<32x128xbf16>
    %c64 = arith.constant 64 : index
    %c0_2 = arith.constant 0 : index
    %2 = vector.load %arg3[%c64, %c0_2] : memref<208x128xbf16, #tpu.memory_space<vmem>>, vector<1x128xbf16>
    %3 = arith.extf %2 : vector<1x128xbf16> to vector<1x128xf32>
    %c80 = arith.constant 80 : index
    %c0_3 = arith.constant 0 : index
    %4 = vector.load %arg3[%c80, %c0_3] : memref<208x128xbf16, #tpu.memory_space<vmem>>, vector<32x128xbf16>
    %c112 = arith.constant 112 : index
    %c0_4 = arith.constant 0 : index
    %5 = vector.load %arg3[%c112, %c0_4] : memref<208x128xbf16, #tpu.memory_space<vmem>>, vector<64x128xbf16>
    %c176 = arith.constant 176 : index
    %c0_5 = arith.constant 0 : index
    %6 = vector.load %arg3[%c176, %c0_5] : memref<208x128xbf16, #tpu.memory_space<vmem>>, vector<32x128xbf16>
    %c0_6 = arith.constant 0 : index
    %c0_7 = arith.constant 0 : index
    %7 = vector.load %arg2[%c0_6, %c0_7] : memref<16x194xf32, #tpu.memory_space<vmem>>, vector<16x194xf32>
    %8 = vector.extract_strided_slice %7 {offsets = [0, 128], sizes = [16, 32], strides = [1, 1]} : vector<16x194xf32> to vector<16x32xf32>
    %9 = vector.extract_strided_slice %7 {offsets = [0, 160], sizes = [16, 32], strides = [1, 1]} : vector<16x194xf32> to vector<16x32xf32>
    %10 = vector.extract_strided_slice %7 {offsets = [0, 192], sizes = [16, 1], strides = [1, 1]} : vector<16x194xf32> to vector<16x1xf32>
    %11 = vector.extract_strided_slice %7 {offsets = [0, 193], sizes = [16, 1], strides = [1, 1]} : vector<16x194xf32> to vector<16x1xf32>
    %c0_8 = arith.constant 0 : index
    %c0_9 = arith.constant 0 : index
    %c0_10 = arith.constant 0 : index
    %12 = vector.load %arg1[%c0_8, %c0_9, %c0_10] : memref<8x16x32xbf16, #tpu.memory_space<vmem>>, vector<8x16x32xbf16>
    %13 = vector.extract_strided_slice %12 {offsets = [0, 0, 0], sizes = [1, 16, 32], strides = [1, 1, 1]} : vector<8x16x32xbf16> to vector<1x16x32xbf16>
    %14 = vector.shape_cast %13 : vector<1x16x32xbf16> to vector<16x32xbf16>
    %cst = arith.constant dense<0.000000e+00> : vector<16x128xf32>
    %15 = tpu.matmul %14, %4, %cst {dimension_numbers = #tpu.dot_dimension_numbers<[1], [0], [0], [1], [0, 0, 1, 1], [], []>} : vector<16x32xbf16>, vector<32x128xbf16>, vector<16x128xf32> -> vector<16x128xf32>
    %cst_11 = arith.constant 0.000000e+00 : f32
    %16 = vector.broadcast %cst_11 : f32 to vector<16x128xf32>
    %17 = arith.maximumf %15, %16 : vector<16x128xf32>
    %18 = vector.extract_strided_slice %17 {offsets = [0, 0], sizes = [16, 32], strides = [1, 1]} : vector<16x128xf32> to vector<16x32xf32>
    %19 = vector.shape_cast %12 : vector<8x16x32xbf16> to vector<128x32xbf16>
    %cst_12 = arith.constant dense<0.000000e+00> : vector<128x128xf32>
    %20 = tpu.matmul %19, %0, %cst_12 {dimension_numbers = #tpu.dot_dimension_numbers<[1], [0], [0], [1], [0, 0, 1, 1], [], []>} : vector<128x32xbf16>, vector<32x128xbf16>, vector<128x128xf32> -> vector<128x128xf32>
    %21 = vector.broadcast %3 : vector<1x128xf32> to vector<128x128xf32>
    %22 = arith.addf %20, %21 : vector<128x128xf32>
    %23 = vector.shape_cast %22 : vector<128x128xf32> to vector<8x16x128xf32>
    %24 = tpu.iota {dimensions = array<i32: 0>} : vector<8x16x32xi32>
    %25 = arith.sitofp %24 : vector<8x16x32xi32> to vector<8x16x32xf32>
    %26 = vector.shape_cast %10 : vector<16x1xf32> to vector<1x16x1xf32>
    %27 = vector.broadcast %26 : vector<1x16x1xf32> to vector<8x16x32xf32>
    %28 = arith.cmpf olt, %25, %27 : vector<8x16x32xf32>
    %29 = arith.extui %28 : vector<8x16x32xi1> to vector<8x16x32xi32>
    %30 = arith.sitofp %29 : vector<8x16x32xi32> to vector<8x16x32xf32>
    %cst_13 = arith.constant 0xFF800000 : f32
    %31 = vector.broadcast %cst_13 : f32 to vector<16x32xf32>
    %32 = vector.extract_strided_slice %23 {offsets = [0, 0, 0], sizes = [1, 16, 128], strides = [1, 1, 1]} : vector<8x16x128xf32> to vector<1x16x128xf32>
    %33 = vector.shape_cast %32 : vector<1x16x128xf32> to vector<16x128xf32>
    %34 = arith.truncf %8 : vector<16x32xf32> to vector<16x32xbf16>
    %cst_14 = arith.constant dense<0.000000e+00> : vector<16x128xf32>
    %35 = tpu.matmul %34, %1, %cst_14 {dimension_numbers = #tpu.dot_dimension_numbers<[1], [0], [0], [1], [0, 0, 1, 1], [], []>} : vector<16x32xbf16>, vector<32x128xbf16>, vector<16x128xf32> -> vector<16x128xf32>
    %36 = arith.addf %33, %35 : vector<16x128xf32>
    %37 = arith.negf %36 : vector<16x128xf32>
    %38 = math.exp %37 : vector<16x128xf32>
    %cst_15 = arith.constant 1.000000e+00 : f32
    %39 = vector.broadcast %cst_15 : f32 to vector<16x128xf32>
    %40 = arith.addf %39, %38 : vector<16x128xf32>
    %41 = arith.divf %39, %40 : vector<16x128xf32>
    %42 = vector.extract_strided_slice %41 {offsets = [0, 0], sizes = [16, 32], strides = [1, 1]} : vector<16x128xf32> to vector<16x32xf32>
    %43 = vector.extract_strided_slice %41 {offsets = [0, 32], sizes = [16, 32], strides = [1, 1]} : vector<16x128xf32> to vector<16x32xf32>
    %44 = vector.extract_strided_slice %41 {offsets = [0, 96], sizes = [16, 32], strides = [1, 1]} : vector<16x128xf32> to vector<16x32xf32>
    %45 = vector.extract_strided_slice %36 {offsets = [0, 64], sizes = [16, 32], strides = [1, 1]} : vector<16x128xf32> to vector<16x32xf32>
    %46 = math.tanh %45 : vector<16x32xf32>
    %47 = arith.mulf %43, %9 : vector<16x32xf32>
    %48 = arith.mulf %42, %46 : vector<16x32xf32>
    %49 = arith.addf %47, %48 : vector<16x32xf32>
    %50 = math.tanh %49 : vector<16x32xf32>
    %51 = arith.mulf %44, %50 : vector<16x32xf32>
    %52 = vector.extract_strided_slice %30 {offsets = [0, 0, 0], sizes = [1, 16, 32], strides = [1, 1, 1]} : vector<8x16x32xf32> to vector<1x16x32xf32>
    %53 = vector.shape_cast %52 : vector<1x16x32xf32> to vector<16x32xf32>
    %54 = arith.mulf %51, %53 : vector<16x32xf32>
    %55 = arith.maximumf %31, %54 : vector<16x32xf32>
    %56 = vector.extract_strided_slice %23 {offsets = [1, 0, 0], sizes = [1, 16, 128], strides = [1, 1, 1]} : vector<8x16x128xf32> to vector<1x16x128xf32>
    %57 = vector.shape_cast %56 : vector<1x16x128xf32> to vector<16x128xf32>
    %58 = arith.truncf %51 : vector<16x32xf32> to vector<16x32xbf16>
    %cst_16 = arith.constant dense<0.000000e+00> : vector<16x128xf32>
    %59 = tpu.matmul %58, %1, %cst_16 {dimension_numbers = #tpu.dot_dimension_numbers<[1], [0], [0], [1], [0, 0, 1, 1], [], []>} : vector<16x32xbf16>, vector<32x128xbf16>, vector<16x128xf32> -> vector<16x128xf32>
    %60 = arith.addf %57, %59 : vector<16x128xf32>
    %61 = arith.negf %60 : vector<16x128xf32>
    %62 = math.exp %61 : vector<16x128xf32>
    %cst_17 = arith.constant 1.000000e+00 : f32
    %63 = vector.broadcast %cst_17 : f32 to vector<16x128xf32>
    %64 = arith.addf %63, %62 : vector<16x128xf32>
    %65 = arith.divf %63, %64 : vector<16x128xf32>
    %66 = vector.extract_strided_slice %65 {offsets = [0, 0], sizes = [16, 32], strides = [1, 1]} : vector<16x128xf32> to vector<16x32xf32>
    %67 = vector.extract_strided_slice %65 {offsets = [0, 32], sizes = [16, 32], strides = [1, 1]} : vector<16x128xf32> to vector<16x32xf32>
    %68 = vector.extract_strided_slice %65 {offsets = [0, 96], sizes = [16, 32], strides = [1, 1]} : vector<16x128xf32> to vector<16x32xf32>
    %69 = vector.extract_strided_slice %60 {offsets = [0, 64], sizes = [16, 32], strides = [1, 1]} : vector<16x128xf32> to vector<16x32xf32>
    %70 = math.tanh %69 : vector<16x32xf32>
    %71 = arith.mulf %67, %49 : vector<16x32xf32>
    %72 = arith.mulf %66, %70 : vector<16x32xf32>
    %73 = arith.addf %71, %72 : vector<16x32xf32>
    %74 = math.tanh %73 : vector<16x32xf32>
    %75 = arith.mulf %68, %74 : vector<16x32xf32>
    %76 = vector.extract_strided_slice %30 {offsets = [1, 0, 0], sizes = [1, 16, 32], strides = [1, 1, 1]} : vector<8x16x32xf32> to vector<1x16x32xf32>
    %77 = vector.shape_cast %76 : vector<1x16x32xf32> to vector<16x32xf32>
    %78 = arith.mulf %75, %77 : vector<16x32xf32>
    %79 = arith.maximumf %55, %78 : vector<16x32xf32>
    %80 = vector.extract_strided_slice %23 {offsets = [2, 0, 0], sizes = [1, 16, 128], strides = [1, 1, 1]} : vector<8x16x128xf32> to vector<1x16x128xf32>
    %81 = vector.shape_cast %80 : vector<1x16x128xf32> to vector<16x128xf32>
    %82 = arith.truncf %75 : vector<16x32xf32> to vector<16x32xbf16>
    %cst_18 = arith.constant dense<0.000000e+00> : vector<16x128xf32>
    %83 = tpu.matmul %82, %1, %cst_18 {dimension_numbers = #tpu.dot_dimension_numbers<[1], [0], [0], [1], [0, 0, 1, 1], [], []>} : vector<16x32xbf16>, vector<32x128xbf16>, vector<16x128xf32> -> vector<16x128xf32>
    %84 = arith.addf %81, %83 : vector<16x128xf32>
    %85 = arith.negf %84 : vector<16x128xf32>
    %86 = math.exp %85 : vector<16x128xf32>
    %cst_19 = arith.constant 1.000000e+00 : f32
    %87 = vector.broadcast %cst_19 : f32 to vector<16x128xf32>
    %88 = arith.addf %87, %86 : vector<16x128xf32>
    %89 = arith.divf %87, %88 : vector<16x128xf32>
    %90 = vector.extract_strided_slice %89 {offsets = [0, 0], sizes = [16, 32], strides = [1, 1]} : vector<16x128xf32> to vector<16x32xf32>
    %91 = vector.extract_strided_slice %89 {offsets = [0, 32], sizes = [16, 32], strides = [1, 1]} : vector<16x128xf32> to vector<16x32xf32>
    %92 = vector.extract_strided_slice %89 {offsets = [0, 96], sizes = [16, 32], strides = [1, 1]} : vector<16x128xf32> to vector<16x32xf32>
    %93 = vector.extract_strided_slice %84 {offsets = [0, 64], sizes = [16, 32], strides = [1, 1]} : vector<16x128xf32> to vector<16x32xf32>
    %94 = math.tanh %93 : vector<16x32xf32>
    %95 = arith.mulf %91, %73 : vector<16x32xf32>
    %96 = arith.mulf %90, %94 : vector<16x32xf32>
    %97 = arith.addf %95, %96 : vector<16x32xf32>
    %98 = math.tanh %97 : vector<16x32xf32>
    %99 = arith.mulf %92, %98 : vector<16x32xf32>
    %100 = vector.extract_strided_slice %30 {offsets = [2, 0, 0], sizes = [1, 16, 32], strides = [1, 1, 1]} : vector<8x16x32xf32> to vector<1x16x32xf32>
    %101 = vector.shape_cast %100 : vector<1x16x32xf32> to vector<16x32xf32>
    %102 = arith.mulf %99, %101 : vector<16x32xf32>
    %103 = arith.maximumf %79, %102 : vector<16x32xf32>
    %104 = vector.extract_strided_slice %23 {offsets = [3, 0, 0], sizes = [1, 16, 128], strides = [1, 1, 1]} : vector<8x16x128xf32> to vector<1x16x128xf32>
    %105 = vector.shape_cast %104 : vector<1x16x128xf32> to vector<16x128xf32>
    %106 = arith.truncf %99 : vector<16x32xf32> to vector<16x32xbf16>
    %cst_20 = arith.constant dense<0.000000e+00> : vector<16x128xf32>
    %107 = tpu.matmul %106, %1, %cst_20 {dimension_numbers = #tpu.dot_dimension_numbers<[1], [0], [0], [1], [0, 0, 1, 1], [], []>} : vector<16x32xbf16>, vector<32x128xbf16>, vector<16x128xf32> -> vector<16x128xf32>
    %108 = arith.addf %105, %107 : vector<16x128xf32>
    %109 = arith.negf %108 : vector<16x128xf32>
    %110 = math.exp %109 : vector<16x128xf32>
    %cst_21 = arith.constant 1.000000e+00 : f32
    %111 = vector.broadcast %cst_21 : f32 to vector<16x128xf32>
    %112 = arith.addf %111, %110 : vector<16x128xf32>
    %113 = arith.divf %111, %112 : vector<16x128xf32>
    %114 = vector.extract_strided_slice %113 {offsets = [0, 0], sizes = [16, 32], strides = [1, 1]} : vector<16x128xf32> to vector<16x32xf32>
    %115 = vector.extract_strided_slice %113 {offsets = [0, 32], sizes = [16, 32], strides = [1, 1]} : vector<16x128xf32> to vector<16x32xf32>
    %116 = vector.extract_strided_slice %113 {offsets = [0, 96], sizes = [16, 32], strides = [1, 1]} : vector<16x128xf32> to vector<16x32xf32>
    %117 = vector.extract_strided_slice %108 {offsets = [0, 64], sizes = [16, 32], strides = [1, 1]} : vector<16x128xf32> to vector<16x32xf32>
    %118 = math.tanh %117 : vector<16x32xf32>
    %119 = arith.mulf %115, %97 : vector<16x32xf32>
    %120 = arith.mulf %114, %118 : vector<16x32xf32>
    %121 = arith.addf %119, %120 : vector<16x32xf32>
    %122 = math.tanh %121 : vector<16x32xf32>
    %123 = arith.mulf %116, %122 : vector<16x32xf32>
    %124 = vector.extract_strided_slice %30 {offsets = [3, 0, 0], sizes = [1, 16, 32], strides = [1, 1, 1]} : vector<8x16x32xf32> to vector<1x16x32xf32>
    %125 = vector.shape_cast %124 : vector<1x16x32xf32> to vector<16x32xf32>
    %126 = arith.mulf %123, %125 : vector<16x32xf32>
    %127 = arith.maximumf %103, %126 : vector<16x32xf32>
    %128 = vector.extract_strided_slice %23 {offsets = [4, 0, 0], sizes = [1, 16, 128], strides = [1, 1, 1]} : vector<8x16x128xf32> to vector<1x16x128xf32>
    %129 = vector.shape_cast %128 : vector<1x16x128xf32> to vector<16x128xf32>
    %130 = arith.truncf %123 : vector<16x32xf32> to vector<16x32xbf16>
    %cst_22 = arith.constant dense<0.000000e+00> : vector<16x128xf32>
    %131 = tpu.matmul %130, %1, %cst_22 {dimension_numbers = #tpu.dot_dimension_numbers<[1], [0], [0], [1], [0, 0, 1, 1], [], []>} : vector<16x32xbf16>, vector<32x128xbf16>, vector<16x128xf32> -> vector<16x128xf32>
    %132 = arith.addf %129, %131 : vector<16x128xf32>
    %133 = arith.negf %132 : vector<16x128xf32>
    %134 = math.exp %133 : vector<16x128xf32>
    %cst_23 = arith.constant 1.000000e+00 : f32
    %135 = vector.broadcast %cst_23 : f32 to vector<16x128xf32>
    %136 = arith.addf %135, %134 : vector<16x128xf32>
    %137 = arith.divf %135, %136 : vector<16x128xf32>
    %138 = vector.extract_strided_slice %137 {offsets = [0, 0], sizes = [16, 32], strides = [1, 1]} : vector<16x128xf32> to vector<16x32xf32>
    %139 = vector.extract_strided_slice %137 {offsets = [0, 32], sizes = [16, 32], strides = [1, 1]} : vector<16x128xf32> to vector<16x32xf32>
    %140 = vector.extract_strided_slice %137 {offsets = [0, 96], sizes = [16, 32], strides = [1, 1]} : vector<16x128xf32> to vector<16x32xf32>
    %141 = vector.extract_strided_slice %132 {offsets = [0, 64], sizes = [16, 32], strides = [1, 1]} : vector<16x128xf32> to vector<16x32xf32>
    %142 = math.tanh %141 : vector<16x32xf32>
    %143 = arith.mulf %139, %121 : vector<16x32xf32>
    %144 = arith.mulf %138, %142 : vector<16x32xf32>
    %145 = arith.addf %143, %144 : vector<16x32xf32>
    %146 = math.tanh %145 : vector<16x32xf32>
    %147 = arith.mulf %140, %146 : vector<16x32xf32>
    %148 = vector.extract_strided_slice %30 {offsets = [4, 0, 0], sizes = [1, 16, 32], strides = [1, 1, 1]} : vector<8x16x32xf32> to vector<1x16x32xf32>
    %149 = vector.shape_cast %148 : vector<1x16x32xf32> to vector<16x32xf32>
    %150 = arith.mulf %147, %149 : vector<16x32xf32>
    %151 = arith.maximumf %127, %150 : vector<16x32xf32>
    %152 = vector.extract_strided_slice %23 {offsets = [5, 0, 0], sizes = [1, 16, 128], strides = [1, 1, 1]} : vector<8x16x128xf32> to vector<1x16x128xf32>
    %153 = vector.shape_cast %152 : vector<1x16x128xf32> to vector<16x128xf32>
    %154 = arith.truncf %147 : vector<16x32xf32> to vector<16x32xbf16>
    %cst_24 = arith.constant dense<0.000000e+00> : vector<16x128xf32>
    %155 = tpu.matmul %154, %1, %cst_24 {dimension_numbers = #tpu.dot_dimension_numbers<[1], [0], [0], [1], [0, 0, 1, 1], [], []>} : vector<16x32xbf16>, vector<32x128xbf16>, vector<16x128xf32> -> vector<16x128xf32>
    %156 = arith.addf %153, %155 : vector<16x128xf32>
    %157 = arith.negf %156 : vector<16x128xf32>
    %158 = math.exp %157 : vector<16x128xf32>
    %cst_25 = arith.constant 1.000000e+00 : f32
    %159 = vector.broadcast %cst_25 : f32 to vector<16x128xf32>
    %160 = arith.addf %159, %158 : vector<16x128xf32>
    %161 = arith.divf %159, %160 : vector<16x128xf32>
    %162 = vector.extract_strided_slice %161 {offsets = [0, 0], sizes = [16, 32], strides = [1, 1]} : vector<16x128xf32> to vector<16x32xf32>
    %163 = vector.extract_strided_slice %161 {offsets = [0, 32], sizes = [16, 32], strides = [1, 1]} : vector<16x128xf32> to vector<16x32xf32>
    %164 = vector.extract_strided_slice %161 {offsets = [0, 96], sizes = [16, 32], strides = [1, 1]} : vector<16x128xf32> to vector<16x32xf32>
    %165 = vector.extract_strided_slice %156 {offsets = [0, 64], sizes = [16, 32], strides = [1, 1]} : vector<16x128xf32> to vector<16x32xf32>
    %166 = math.tanh %165 : vector<16x32xf32>
    %167 = arith.mulf %163, %145 : vector<16x32xf32>
    %168 = arith.mulf %162, %166 : vector<16x32xf32>
    %169 = arith.addf %167, %168 : vector<16x32xf32>
    %170 = math.tanh %169 : vector<16x32xf32>
    %171 = arith.mulf %164, %170 : vector<16x32xf32>
    %172 = vector.extract_strided_slice %30 {offsets = [5, 0, 0], sizes = [1, 16, 32], strides = [1, 1, 1]} : vector<8x16x32xf32> to vector<1x16x32xf32>
    %173 = vector.shape_cast %172 : vector<1x16x32xf32> to vector<16x32xf32>
    %174 = arith.mulf %171, %173 : vector<16x32xf32>
    %175 = arith.maximumf %151, %174 : vector<16x32xf32>
    %176 = vector.extract_strided_slice %23 {offsets = [6, 0, 0], sizes = [1, 16, 128], strides = [1, 1, 1]} : vector<8x16x128xf32> to vector<1x16x128xf32>
    %177 = vector.shape_cast %176 : vector<1x16x128xf32> to vector<16x128xf32>
    %178 = arith.truncf %171 : vector<16x32xf32> to vector<16x32xbf16>
    %cst_26 = arith.constant dense<0.000000e+00> : vector<16x128xf32>
    %179 = tpu.matmul %178, %1, %cst_26 {dimension_numbers = #tpu.dot_dimension_numbers<[1], [0], [0], [1], [0, 0, 1, 1], [], []>} : vector<16x32xbf16>, vector<32x128xbf16>, vector<16x128xf32> -> vector<16x128xf32>
    %180 = arith.addf %177, %179 : vector<16x128xf32>
    %181 = arith.negf %180 : vector<16x128xf32>
    %182 = math.exp %181 : vector<16x128xf32>
    %cst_27 = arith.constant 1.000000e+00 : f32
    %183 = vector.broadcast %cst_27 : f32 to vector<16x128xf32>
    %184 = arith.addf %183, %182 : vector<16x128xf32>
    %185 = arith.divf %183, %184 : vector<16x128xf32>
    %186 = vector.extract_strided_slice %185 {offsets = [0, 0], sizes = [16, 32], strides = [1, 1]} : vector<16x128xf32> to vector<16x32xf32>
    %187 = vector.extract_strided_slice %185 {offsets = [0, 32], sizes = [16, 32], strides = [1, 1]} : vector<16x128xf32> to vector<16x32xf32>
    %188 = vector.extract_strided_slice %185 {offsets = [0, 96], sizes = [16, 32], strides = [1, 1]} : vector<16x128xf32> to vector<16x32xf32>
    %189 = vector.extract_strided_slice %180 {offsets = [0, 64], sizes = [16, 32], strides = [1, 1]} : vector<16x128xf32> to vector<16x32xf32>
    %190 = math.tanh %189 : vector<16x32xf32>
    %191 = arith.mulf %187, %169 : vector<16x32xf32>
    %192 = arith.mulf %186, %190 : vector<16x32xf32>
    %193 = arith.addf %191, %192 : vector<16x32xf32>
    %194 = math.tanh %193 : vector<16x32xf32>
    %195 = arith.mulf %188, %194 : vector<16x32xf32>
    %196 = vector.extract_strided_slice %30 {offsets = [6, 0, 0], sizes = [1, 16, 32], strides = [1, 1, 1]} : vector<8x16x32xf32> to vector<1x16x32xf32>
    %197 = vector.shape_cast %196 : vector<1x16x32xf32> to vector<16x32xf32>
    %198 = arith.mulf %195, %197 : vector<16x32xf32>
    %199 = arith.maximumf %175, %198 : vector<16x32xf32>
    %200 = vector.extract_strided_slice %23 {offsets = [7, 0, 0], sizes = [1, 16, 128], strides = [1, 1, 1]} : vector<8x16x128xf32> to vector<1x16x128xf32>
    %201 = vector.shape_cast %200 : vector<1x16x128xf32> to vector<16x128xf32>
    %202 = arith.truncf %195 : vector<16x32xf32> to vector<16x32xbf16>
    %cst_28 = arith.constant dense<0.000000e+00> : vector<16x128xf32>
    %203 = tpu.matmul %202, %1, %cst_28 {dimension_numbers = #tpu.dot_dimension_numbers<[1], [0], [0], [1], [0, 0, 1, 1], [], []>} : vector<16x32xbf16>, vector<32x128xbf16>, vector<16x128xf32> -> vector<16x128xf32>
    %204 = arith.addf %201, %203 : vector<16x128xf32>
    %205 = arith.negf %204 : vector<16x128xf32>
    %206 = math.exp %205 : vector<16x128xf32>
    %cst_29 = arith.constant 1.000000e+00 : f32
    %207 = vector.broadcast %cst_29 : f32 to vector<16x128xf32>
    %208 = arith.addf %207, %206 : vector<16x128xf32>
    %209 = arith.divf %207, %208 : vector<16x128xf32>
    %210 = vector.extract_strided_slice %209 {offsets = [0, 0], sizes = [16, 32], strides = [1, 1]} : vector<16x128xf32> to vector<16x32xf32>
    %211 = vector.extract_strided_slice %209 {offsets = [0, 32], sizes = [16, 32], strides = [1, 1]} : vector<16x128xf32> to vector<16x32xf32>
    %212 = vector.extract_strided_slice %209 {offsets = [0, 96], sizes = [16, 32], strides = [1, 1]} : vector<16x128xf32> to vector<16x32xf32>
    %213 = vector.extract_strided_slice %204 {offsets = [0, 64], sizes = [16, 32], strides = [1, 1]} : vector<16x128xf32> to vector<16x32xf32>
    %214 = math.tanh %213 : vector<16x32xf32>
    %215 = arith.mulf %211, %193 : vector<16x32xf32>
    %216 = arith.mulf %210, %214 : vector<16x32xf32>
    %217 = arith.addf %215, %216 : vector<16x32xf32>
    %218 = math.tanh %217 : vector<16x32xf32>
    %219 = arith.mulf %212, %218 : vector<16x32xf32>
    %220 = vector.extract_strided_slice %30 {offsets = [7, 0, 0], sizes = [1, 16, 32], strides = [1, 1, 1]} : vector<8x16x32xf32> to vector<1x16x32xf32>
    %221 = vector.shape_cast %220 : vector<1x16x32xf32> to vector<16x32xf32>
    %222 = arith.mulf %219, %221 : vector<16x32xf32>
    %223 = arith.maximumf %199, %222 : vector<16x32xf32>
    %224 = arith.mulf %18, %223 : vector<16x32xf32>
    %225 = vector.extract_strided_slice %7 {offsets = [0, 0], sizes = [16, 64], strides = [1, 1]} : vector<16x194xf32> to vector<16x64xf32>
    %226 = arith.truncf %225 : vector<16x64xf32> to vector<16x64xbf16>
    %cst_30 = arith.constant dense<0.000000e+00> : vector<16x128xf32>
    %227 = tpu.matmul %226, %5, %cst_30 {dimension_numbers = #tpu.dot_dimension_numbers<[1], [0], [0], [1], [0, 0, 1, 1], [], []>} : vector<16x64xbf16>, vector<64x128xbf16>, vector<16x128xf32> -> vector<16x128xf32>
    %228 = arith.truncf %224 : vector<16x32xf32> to vector<16x32xbf16>
    %cst_31 = arith.constant dense<0.000000e+00> : vector<16x128xf32>
    %229 = tpu.matmul %228, %6, %cst_31 {dimension_numbers = #tpu.dot_dimension_numbers<[1], [0], [0], [1], [0, 0, 1, 1], [], []>} : vector<16x32xbf16>, vector<32x128xbf16>, vector<16x128xf32> -> vector<16x128xf32>
    %230 = arith.addf %227, %229 : vector<16x128xf32>
    %231 = vector.extract_strided_slice %230 {offsets = [0, 0], sizes = [16, 64], strides = [1, 1]} : vector<16x128xf32> to vector<16x64xf32>
    %232 = vector.extract_strided_slice %7 {offsets = [0, 64], sizes = [16, 64], strides = [1, 1]} : vector<16x194xf32> to vector<16x64xf32>
    %233 = arith.mulf %231, %232 : vector<16x64xf32>
    %cst_32 = arith.constant dense<0.000000e+00> : vector<16xf32>
    %234 = vector.multi_reduction <add>, %233, %cst_32 [1] : vector<16x64xf32> to vector<16xf32>
    %235 = vector.shape_cast %234 : vector<16xf32> to vector<16x1xf32>
    %236 = arith.addf %235, %11 : vector<16x1xf32>
    %c0_33 = arith.constant 0 : index
    %c0_34 = arith.constant 0 : index
    %237 = vector.load %arg4[%c0_33, %c0_34] : memref<16x1xf32, #tpu.memory_space<vmem>>, vector<16x1xf32>
    tpu.vector_store %arg4[%c0_33, %c0_34], %236 {strides = array<i32>} : memref<16x1xf32, #tpu.memory_space<vmem>>, vector<16x1xf32>,
    return
  }
  func.func @transform_0(%arg0: i32) -> (i32, i32, i32) {
    %c0_i32 = arith.constant 0 : i32
    %c0_i32_0 = arith.constant 0 : i32
    %c0_i32_1 = arith.constant 0 : i32
    return %c0_i32, %arg0, %c0_i32_0 : i32, i32, i32
  }
  func.func @transform_1(%arg0: i32) -> (i32, i32) {
    %c0_i32 = arith.constant 0 : i32
    %c0_i32_0 = arith.constant 0 : i32
    return %arg0, %c0_i32 : i32, i32
  }
  func.func @transform_2(%arg0: i32) -> (i32, i32) {
    %c0_i32 = arith.constant 0 : i32
    %c0_i32_0 = arith.constant 0 : i32
    %c0_i32_1 = arith.constant 0 : i32
    return %c0_i32, %c0_i32_0 : i32, i32
  }
  func.func @transform_3(%arg0: i32) -> (i32, i32) {
    %c0_i32 = arith.constant 0 : i32
    %c0_i32_0 = arith.constant 0 : i32
    return %arg0, %c0_i32 : i32, i32
  }
}

</mosaic_0001>

<llo_original>
// kernel: expan_match_sequence_forward.1
$region0: #{expan_match_sequence_forward.1}
  #allocation0 [shape = 'u32[]', space=smem, size = 0x4, offset = 0x4, fixed_abs, tag = 'smem constant byte address 0x4 - core index']
  #allocation1 [shape = 'u32[144,128]{1,0:T(1,128)}', space=vmem, size = 0x12000, scoped, tag = 'internal scratch']
  %s0 = inlined_call_operand.vmem [shape: bf16[8,16,32], index: 0, kind: input, shape index: {}]
  %s1 = inlined_call_operand.vmem [shape: f32[16,194], index: 1, kind: input, shape index: {}]
  %s2 = inlined_call_operand.vmem [shape: bf16[208,128], index: 2, kind: input, shape index: {}]
  %s3 = inlined_call_operand.vmem [shape: f32[16,1], index: 3, kind: output, shape index: {}]
  %s4 = sld [smem:[#allocation0]]
  $region22: #{expan_match_sequence_forward.1} parent=0
    _
  %s6 = ssub.s32 1, %s4
  %s7 = scalar_select 0, %s6, %s4
  // Predicated region
  $region2: #{expan_match_sequence_forward.1} parent=0 // pred_check
    _
  $region3: #{expan_match_sequence_forward.1} parent=0 // pred_check_branch
    %9 = sbr.rel (0) target = $region5
  $region4: #{expan_match_sequence_forward.1} parent=0 // pred_region
    _
  $region5: #{expan_match_sequence_forward.1} parent=0 // pred_fallthru
    _
  // Predicated region
  $region6: #{expan_match_sequence_forward.1} parent=0 // pred_check
    _
  $region7: #{expan_match_sequence_forward.1} parent=0 // pred_check_branch
    %11 = sbr.rel (0) target = $region9
  $region8: #{expan_match_sequence_forward.1} parent=0 // pred_region
    _
  $region9: #{expan_match_sequence_forward.1} parent=0 // pred_fallthru
    _
  // Predicated region
  $region10: #{expan_match_sequence_forward.1} parent=0 // pred_check
    _
  $region11: #{expan_match_sequence_forward.1} parent=0 // pred_check_branch
    %13 = sbr.rel (0) target = $region13
  $region12: #{expan_match_sequence_forward.1} parent=0 // pred_region
    _
  $region13: #{expan_match_sequence_forward.1} parent=0 // pred_fallthru
    _
  %v15 = vld [vmem:[%s2] sm:$0xf]
  %v16 = vld [vmem:[%s2 + $0x4] sm:$0xf]
  %v17 = vld [vmem:[%s2 + $0x8] sm:$0xf]
  %v18 = vld [vmem:[%s2 + $0xc] sm:$0xf]
  %v19 = vld [vmem:[%s2 + $0x10] sm:$0xf]
  %v20 = vld [vmem:[%s2 + $0x14] sm:$0xf]
  %v21 = vld [vmem:[%s2 + $0x18] sm:$0xf]
  %v22 = vld [vmem:[%s2 + $0x1c] sm:$0xf]
  %v23 = vld [vmem:[%s2 + $0x20] sm:$0x1]
  %v24 = vunpack.c.l.bf16 %v23
  %v25 = vld [vmem:[%s2 + $0x28] sm:$0xf]
  %v26 = vld [vmem:[%s2 + $0x2c] sm:$0xf]
  %v27 = vld [vmem:[%s2 + $0x30] sm:$0xf]
  %v28 = vld [vmem:[%s2 + $0x34] sm:$0xf]
  %v29 = vld [vmem:[%s2 + $0x38] sm:$0xf]
  %v30 = vld [vmem:[%s2 + $0x3c] sm:$0xf]
  %v31 = vld [vmem:[%s2 + $0x40] sm:$0xf]
  %v32 = vld [vmem:[%s2 + $0x44] sm:$0xf]
  %v33 = vld [vmem:[%s2 + $0x48] sm:$0xf]
  %v34 = vld [vmem:[%s2 + $0x4c] sm:$0xf]
  %v35 = vld [vmem:[%s2 + $0x50] sm:$0xf]
  %v36 = vld [vmem:[%s2 + $0x54] sm:$0xf]
  %v37 = vld [vmem:[%s2 + $0x58] sm:$0xf]
  %v38 = vld [vmem:[%s2 + $0x5c] sm:$0xf]
  %v39 = vld [vmem:[%s2 + $0x60] sm:$0xf]
  %v40 = vld [vmem:[%s2 + $0x64] sm:$0xf]
  %v41 = vld [vmem:[%s1] sm:$0xff]
  %v42 = vld [vmem:[%s1 + $0x8] sm:$0xff]
  %v43 = vld [vmem:[%s1 + $0x10] sm:$0xff]
  %v44 = vld [vmem:[%s1 + $0x18] sm:$0xff]
  %v45 = vld [vmem:[%s0] sm:$0xf]
  %v46 = vld [vmem:[%s0 + $0x4] sm:$0xf]
  %v47 = vld [vmem:[%s0 + $0x8] sm:$0xf]
  %v48 = vld [vmem:[%s0 + $0xc] sm:$0xf]
  %v49 = vld [vmem:[%s0 + $0x10] sm:$0xf]
  %v50 = vld [vmem:[%s0 + $0x14] sm:$0xf]
  %v51 = vld [vmem:[%s0 + $0x18] sm:$0xf]
  %v52 = vld [vmem:[%s0 + $0x1c] sm:$0xf]
  %v53 = vld [vmem:[%s0 + $0x20] sm:$0xf]
  %v54 = vld [vmem:[%s0 + $0x24] sm:$0xf]
  %v55 = vld [vmem:[%s0 + $0x28] sm:$0xf]
  %v56 = vld [vmem:[%s0 + $0x2c] sm:$0xf]
  %v57 = vld [vmem:[%s0 + $0x30] sm:$0xf]
  %v58 = vld [vmem:[%s0 + $0x34] sm:$0xf]
  %v59 = vld [vmem:[%s0 + $0x38] sm:$0xf]
  %v60 = vld [vmem:[%s0 + $0x3c] sm:$0xf]
  %v63 = vunpack.c.l.b16 %v45
  %v64 = vunpack.c.l.b16 %v46
  %v65 = vpack.c.b16 %v64, %v63
  %v70 = vunpack.c.l.b16 %v25
  %v71 = vunpack.c.l.b16 %v26
  %v72 = vunpack.c.l.b16 %v27
  %v73 = vunpack.c.l.b16 %v28
  %v74 = vpack.c.b16 %v71, %v70
  %v75 = vpack.c.b16 %v73, %v72
  %vm78 = vcmask 261120
  %v80 = vsel %vm78, %v65, 0
  %82 = vmatprep.subr.bf16.mxu0 0
  %83 = vmatpush1.bf16.msra.mxu0 %v74
  %84 = vmatprep.subr.bf16.mxu0 0
  %85 = vmatpush1.bf16.msra.mxu0 %v75
  %86 = vmatprep.subr.bf16.mxu0 0
  %87 = vmatpush1.bf16.msra.mxu0 0
  %88 = vmatprep.subr.bf16.mxu0 0
  %89 = vmatpush1.bf16.msra.mxu0 0
  %90 = vmatprep.subr.bf16.mxu0 0
  %91 = vmatpush1.bf16.msra.mxu0 0
  %92 = vmatprep.subr.bf16.mxu0 0
  %93 = vmatpush1.bf16.msra.mxu0 0
  %94 = vmatprep.subr.bf16.mxu0 0
  %95 = vmatpush1.bf16.msra.mxu0 0
  %96 = vmatprep.subr.bf16.mxu0 0
  %97 = vmatpush1.bf16.msra.mxu0 0
  %98 = vmatprep.subr.bf16.mxu0 0
  %99 = vmatpush1.bf16.msra.mxu0 0
  %100 = vmatprep.subr.bf16.mxu0 0
  %101 = vmatpush1.bf16.msra.mxu0 0
  %102 = vmatprep.subr.bf16.mxu0 0
  %103 = vmatpush1.bf16.msra.mxu0 0
  %104 = vmatprep.subr.bf16.mxu0 0
  %105 = vmatpush1.bf16.msra.mxu0 0
  %106 = vmatprep.subr.bf16.mxu0 0
  %107 = vmatpush1.bf16.msra.mxu0 0
  %108 = vmatprep.subr.bf16.mxu0 0
  %109 = vmatpush1.bf16.msra.mxu0 0
  %110 = vmatprep.subr.bf16.mxu0 0
  %111 = vmatpush1.bf16.msra.mxu0 0
  %112 = vmatprep.subr.bf16.mxu0 0
  %113 = vmatpush1.bf16.msra.mxu0 0
  %114 = vmatprep.mubr.bf16.mxu0 0
  %115 = vmatmul.mubr.bf16.gmra.mrb[0].mxu0 %v80
  %v116 = vpop.f32.mrb[0].mxu0
  %v117 = vadd.f32 0.0, %v116
  %v118 = vpop.f32.mrb[0].mxu0
  %v119 = vpop.f32.mrb[0].mxu0
  %v120 = vadd.f32 0.0, %v119
  %v121 = vpop.f32.mrb[0].mxu0
  %122 = vdwg.mxu0
  %v123 = vmax.f32 %v117, 0.0
  %v124 = vmax.f32 %v120, 0.0
  %v125 = vlaneseq
  %v126 = vshrl.u32 %v125, 7
  %v127 = vsub.s32 0, %v126
  %v128 = vrot.slane %v24, %v127
  %v143 = vunpack.c.l.b16 %v47
  %v144 = vunpack.c.l.b16 %v48
  %v145 = vunpack.c.l.b16 %v49
  %v146 = vunpack.c.l.b16 %v50
  %v147 = vunpack.c.l.b16 %v51
  %v148 = vunpack.c.l.b16 %v52
  %v149 = vunpack.c.l.b16 %v53
  %v150 = vunpack.c.l.b16 %v54
  %v151 = vunpack.c.l.b16 %v55
  %v152 = vunpack.c.l.b16 %v56
  %v153 = vunpack.c.l.b16 %v57
  %v154 = vunpack.c.l.b16 %v58
  %v155 = vunpack.c.l.b16 %v59
  %v156 = vunpack.c.l.b16 %v60
  %v157 = vpack.c.b16 %v144, %v143
  %v158 = vpack.c.b16 %v146, %v145
  %v159 = vpack.c.b16 %v148, %v147
  %v160 = vpack.c.b16 %v150, %v149
  %v161 = vpack.c.b16 %v152, %v151
  %v162 = vpack.c.b16 %v154, %v153
  %v163 = vpack.c.b16 %v156, %v155
  %v168 = vunpack.c.l.b16 %v15
  %v169 = vunpack.c.l.b16 %v16
  %v170 = vunpack.c.l.b16 %v17
  %v171 = vunpack.c.l.b16 %v18
  %v172 = vpack.c.b16 %v169, %v168
  %v173 = vpack.c.b16 %v171, %v170
  %v177 = vsel %vm78, %v157, 0
  %v180 = vsel %vm78, %v158, 0
  %v183 = vsel %vm78, %v159, 0
  %v186 = vsel %vm78, %v160, 0
  %v189 = vsel %vm78, %v161, 0
  %v192 = vsel %vm78, %v162, 0
  %v195 = vsel %vm78, %v163, 0
  %197 = vmatprep.subr.bf16.mxu0 0
  %198 = vmatpush1.bf16.msra.mxu0 %v172
  %199 = vmatprep.subr.bf16.mxu0 0
  %200 = vmatpush1.bf16.msra.mxu0 %v173
  %201 = vmatprep.subr.bf16.mxu0 0
  %202 = vmatpush1.bf16.msra.mxu0 0
  %203 = vmatprep.subr.bf16.mxu0 0
  %204 = vmatpush1.bf16.msra.mxu0 0
  %205 = vmatprep.subr.bf16.mxu0 0
  %206 = vmatpush1.bf16.msra.mxu0 0
  %207 = vmatprep.subr.bf16.mxu0 0
  %208 = vmatpush1.bf16.msra.mxu0 0
  %209 = vmatprep.subr.bf16.mxu0 0
  %210 = vmatpush1.bf16.msra.mxu0 0
  %211 = vmatprep.subr.bf16.mxu0 0
  %212 = vmatpush1.bf16.msra.mxu0 0
  %213 = vmatprep.subr.bf16.mxu0 0
  %214 = vmatpush1.bf16.msra.mxu0 0
  %215 = vmatprep.subr.bf16.mxu0 0
  %216 = vmatpush1.bf16.msra.mxu0 0
  %217 = vmatprep.subr.bf16.mxu0 0
  %218 = vmatpush1.bf16.msra.mxu0 0
  %219 = vmatprep.subr.bf16.mxu0 0
  %220 = vmatpush1.bf16.msra.mxu0 0
  %221 = vmatprep.subr.bf16.mxu0 0
  %222 = vmatpush1.bf16.msra.mxu0 0
  %223 = vmatprep.subr.bf16.mxu0 0
  %224 = vmatpush1.bf16.msra.mxu0 0
  %225 = vmatprep.subr.bf16.mxu0 0
  %226 = vmatpush1.bf16.msra.mxu0 0
  %227 = vmatprep.subr.bf16.mxu0 0
  %228 = vmatpush1.bf16.msra.mxu0 0
  %229 = vmatprep.mubr.bf16.mxu0 0
  %230 = vmatmul.mubr.bf16.gmra.mrb[0].mxu0 %v80
  %v231 = vpop.f32.mrb[0].mxu0
  %v232 = vadd.f32 %v128, %v231
  %v233 = vpop.f32.mrb[0].mxu0
  %v234 = vpop.f32.mrb[0].mxu0
  %v235 = vadd.f32 %v128, %v234
  %v236 = vpop.f32.mrb[0].mxu0
  %237 = vmatprep.mubr.bf16.mxu0 0
  %238 = vmatmul.mubr.bf16.gmra.mrb[0].mxu0 %v177
  %v239 = vpop.f32.mrb[0].mxu0
  %v240 = vadd.f32 %v128, %v239
  %v241 = vpop.f32.mrb[0].mxu0
  %v242 = vpop.f32.mrb[0].mxu0
  %v243 = vadd.f32 %v128, %v242
  %v244 = vpop.f32.mrb[0].mxu0
  %245 = vmatprep.mubr.bf16.mxu0 0
  %246 = vmatmul.mubr.bf16.gmra.mrb[0].mxu0 %v180
  %v247 = vpop.f32.mrb[0].mxu0
  %v248 = vadd.f32 %v128, %v247
  %v249 = vpop.f32.mrb[0].mxu0
  %v250 = vpop.f32.mrb[0].mxu0
  %v251 = vadd.f32 %v128, %v250
  %v252 = vpop.f32.mrb[0].mxu0
  %253 = vmatprep.mubr.bf16.mxu0 0
  %254 = vmatmul.mubr.bf16.gmra.mrb[0].mxu0 %v183
  %v255 = vpop.f32.mrb[0].mxu0
  %v256 = vadd.f32 %v128, %v255
  %v257 = vpop.f32.mrb[0].mxu0
  %v258 = vpop.f32.mrb[0].mxu0
  %v259 = vadd.f32 %v128, %v258
  %v260 = vpop.f32.mrb[0].mxu0
  %261 = vmatprep.mubr.bf16.mxu0 0
  %262 = vmatmul.mubr.bf16.gmra.mrb[0].mxu0 %v186
  %v263 = vpop.f32.mrb[0].mxu0
  %v264 = vadd.f32 %v128, %v263
  %v265 = vpop.f32.mrb[0].mxu0
  %v266 = vpop.f32.mrb[0].mxu0
  %v267 = vadd.f32 %v128, %v266
  %v268 = vpop.f32.mrb[0].mxu0
  %269 = vmatprep.mubr.bf16.mxu0 0
  %270 = vmatmul.mubr.bf16.gmra.mrb[0].mxu0 %v189
  %v271 = vpop.f32.mrb[0].mxu0
  %v272 = vadd.f32 %v128, %v271
  %v273 = vpop.f32.mrb[0].mxu0
  %v274 = vpop.f32.mrb[0].mxu0
  %v275 = vadd.f32 %v128, %v274
  %v276 = vpop.f32.mrb[0].mxu0
  %277 = vmatprep.mubr.bf16.mxu0 0
  %278 = vmatmul.mubr.bf16.gmra.mrb[0].mxu0 %v192
  %v279 = vpop.f32.mrb[0].mxu0
  %v280 = vadd.f32 %v128, %v279
  %v281 = vpop.f32.mrb[0].mxu0
  %v282 = vpop.f32.mrb[0].mxu0
  %v283 = vadd.f32 %v128, %v282
  %v284 = vpop.f32.mrb[0].mxu0
  %285 = vmatprep.mubr.bf16.mxu0 0
  %286 = vmatmul.mubr.bf16.gmra.mrb[0].mxu0 %v195
  %v287 = vpop.f32.mrb[0].mxu0
  %v288 = vadd.f32 %v128, %v287
  %v289 = vpop.f32.mrb[0].mxu0
  %v290 = vpop.f32.mrb[0].mxu0
  %v291 = vadd.f32 %v128, %v290
  %v292 = vpop.f32.mrb[0].mxu0
  %293 = vdwg.mxu0
  %v294 = vcvt.s32.f32 0
  %v295 = vcvt.s32.f32 1
  %v296 = vcvt.s32.f32 2
  %v297 = vcvt.s32.f32 3
  %v298 = vcvt.s32.f32 4
  %v299 = vcvt.s32.f32 5
  %v300 = vcvt.s32.f32 6
  %v301 = vcvt.s32.f32 7
  %303 = vset.pattern.permute.xlu0 64
  %304 = vperm.xlu0 %303, %v42
  %v305 = vpop.permute.xlu0 %304
  %308 = vset.pattern.permute.xlu0 64
  %309 = vperm.xlu0 %308, %v44
  %v310 = vpop.permute.xlu0 %309
  %vm312 = vcmp.lt.f32.partialorder %v294, %v305
  %vm313 = vcmp.lt.f32.partialorder %v294, %v310
  %vm314 = vcmp.lt.f32.partialorder %v295, %v305
  %vm315 = vcmp.lt.f32.partialorder %v295, %v310
  %vm316 = vcmp.lt.f32.partialorder %v296, %v305
  %vm317 = vcmp.lt.f32.partialorder %v296, %v310
  %vm318 = vcmp.lt.f32.partialorder %v297, %v305
  %vm319 = vcmp.lt.f32.partialorder %v297, %v310
  %vm320 = vcmp.lt.f32.partialorder %v298, %v305
  %vm321 = vcmp.lt.f32.partialorder %v298, %v310
  %vm322 = vcmp.lt.f32.partialorder %v299, %v305
  %vm323 = vcmp.lt.f32.partialorder %v299, %v310
  %vm324 = vcmp.lt.f32.partialorder %v300, %v305
  %vm325 = vcmp.lt.f32.partialorder %v300, %v310
  %vm326 = vcmp.lt.f32.partialorder %v301, %v305
  %vm327 = vcmp.lt.f32.partialorder %v301, %v310
  %v328 = vsel %vm312, 1, 0
  %v329 = vsel %vm313, 1, 0
  %v330 = vsel %vm314, 1, 0
  %v331 = vsel %vm315, 1, 0
  %v332 = vsel %vm316, 1, 0
  %v333 = vsel %vm317, 1, 0
  %v334 = vsel %vm318, 1, 0
  %v335 = vsel %vm319, 1, 0
  %v336 = vsel %vm320, 1, 0
  %v337 = vsel %vm321, 1, 0
  %v338 = vsel %vm322, 1, 0
  %v339 = vsel %vm323, 1, 0
  %v340 = vsel %vm324, 1, 0
  %v341 = vsel %vm325, 1, 0
  %v342 = vsel %vm326, 1, 0
  %v343 = vsel %vm327, 1, 0
  %v344 = vcvt.s32.f32 %v328
  %v345 = vcvt.s32.f32 %v329
  %v346 = vcvt.s32.f32 %v330
  %v347 = vcvt.s32.f32 %v331
  %v348 = vcvt.s32.f32 %v332
  %v349 = vcvt.s32.f32 %v333
  %v350 = vcvt.s32.f32 %v334
  %v351 = vcvt.s32.f32 %v335
  %v352 = vcvt.s32.f32 %v336
  %v353 = vcvt.s32.f32 %v337
  %v354 = vcvt.s32.f32 %v338
  %v355 = vcvt.s32.f32 %v339
  %v356 = vcvt.s32.f32 %v340
  %v357 = vcvt.s32.f32 %v341
  %v358 = vcvt.s32.f32 %v342
  %v359 = vcvt.s32.f32 %v343
  %v360 = vpack.c.bf16 %v44, %v42
  %v365 = vunpack.c.l.b16 %v19
  %v366 = vunpack.c.l.b16 %v20
  %v367 = vunpack.c.l.b16 %v21
  %v368 = vunpack.c.l.b16 %v22
  %v369 = vpack.c.b16 %v366, %v365
  %v370 = vpack.c.b16 %v368, %v367
  %v374 = vsel %vm78, %v360, 0
  %376 = vmatprep.subr.bf16.mxu0 0
  %377 = vmatpush1.bf16.msra.mxu0 %v369
  %378 = vmatprep.subr.bf16.mxu0 0
  %379 = vmatpush1.bf16.msra.mxu0 %v370
  %380 = vmatprep.subr.bf16.mxu0 0
  %381 = vmatpush1.bf16.msra.mxu0 0
  %382 = vmatprep.subr.bf16.mxu0 0
  %383 = vmatpush1.bf16.msra.mxu0 0
  %384 = vmatprep.subr.bf16.mxu0 0
  %385 = vmatpush1.bf16.msra.mxu0 0
  %386 = vmatprep.subr.bf16.mxu0 0
  %387 = vmatpush1.bf16.msra.mxu0 0
  %388 = vmatprep.subr.bf16.mxu0 0
  %389 = vmatpush1.bf16.msra.mxu0 0
  %390 = vmatprep.subr.bf16.mxu0 0
  %391 = vmatpush1.bf16.msra.mxu0 0
  %392 = vmatprep.subr.bf16.mxu0 0
  %393 = vmatpush1.bf16.msra.mxu0 0
  %394 = vmatprep.subr.bf16.mxu0 0
  %395 = vmatpush1.bf16.msra.mxu0 0
  %396 = vmatprep.subr.bf16.mxu0 0
  %397 = vmatpush1.bf16.msra.mxu0 0
  %398 = vmatprep.subr.bf16.mxu0 0
  %399 = vmatpush1.bf16.msra.mxu0 0
  %400 = vmatprep.subr.bf16.mxu0 0
  %401 = vmatpush1.bf16.msra.mxu0 0
  %402 = vmatprep.subr.bf16.mxu0 0
  %403 = vmatpush1.bf16.msra.mxu0 0
  %404 = vmatprep.subr.bf16.mxu0 0
  %405 = vmatpush1.bf16.msra.mxu0 0
  %406 = vmatprep.subr.bf16.mxu0 0
  %407 = vmatpush1.bf16.msra.mxu0 0
  %408 = vmatprep.mubr.bf16.mxu0 0
  %409 = vmatmul.mubr.bf16.gmra.mrb[0].mxu0 %v374
  %v410 = vpop.f32.mrb[0].mxu0
  %v411 = vadd.f32 0.0, %v410
  %v412 = vpop.f32.mrb[0].mxu0
  %v413 = vpop.f32.mrb[0].mxu0
  %v414 = vadd.f32 0.0, %v413
  %v415 = vpop.f32.mrb[0].mxu0
  %416 = vdwg.mxu0
  %v417 = vadd.f32 %v232, %v411
  %v418 = vadd.f32 %v235, %v414
  %v419 = vxor.u32 %v417, 2147483648
  %v420 = vxor.u32 %v418, 2147483648
  %v421 = vmul.f32 %v419, 1.442695
  %v422 = vpow.pop %v421
  %v423 = vmul.f32 %v420, 1.442695
  %v424 = vpow.pop %v423
  %v425 = vadd.f32 %v422, 1.0
  %v426 = vadd.f32 %v424, 1.0
  %v427 = vrcp.pop %v425
  %v428 = vmul.f32 1.0, %v427
  %v429 = vrcp.pop %v426
  %v430 = vmul.f32 1.0, %v429
  %v431 = vtanh.pop %v417
  %v432 = vtanh.pop %v418
  %v433 = vmul.f32 %v428, %v42
  %v434 = vmul.f32 %v430, %v44
  %437 = vrot.lane.b32.xlu0 %v431, 64
  %v438 = vpop.permute.xlu0 %437
  %439 = vrot.lane.b32.xlu0 %v432, 64
  %v440 = vpop.permute.xlu0 %439
  %v443 = vmul.f32 %v428, %v438
  %v444 = vmul.f32 %v430, %v440
  %447 = vrot.lane.b32.xlu0 %v443, 32
  %v448 = vpop.permute.xlu0 %447
  %449 = vrot.lane.b32.xlu0 %v444, 32
  %v450 = vpop.permute.xlu0 %449
  %v453 = vadd.f32 %v433, %v448
  %v454 = vadd.f32 %v434, %v450
  %v455 = vtanh.pop %v453
  %v456 = vtanh.pop %v454
  %459 = vrot.lane.b32.xlu0 %v455, 64
  %v460 = vpop.permute.xlu0 %459
  %461 = vrot.lane.b32.xlu0 %v456, 64
  %v462 = vpop.permute.xlu0 %461
  %v465 = vmul.f32 %v428, %v460
  %v466 = vmul.f32 %v430, %v462
  %v467 = vmul.f32 %v465, %v344
  %v468 = vmul.f32 %v466, %v345
  %v469 = vpack.c.bf16 %v466, %v465
  %471 = vrot.lane.b32.xlu0 %v469, 32
  %v472 = vpop.permute.xlu0 %471
  %v474 = vsel %vm78, %v472, 0
  %476 = vmatprep.subr.bf16.mxu0 0
  %477 = vmatpush1.bf16.msra.mxu0 %v369
  %478 = vmatprep.subr.bf16.mxu0 0
  %479 = vmatpush1.bf16.msra.mxu0 %v370
  %480 = vmatprep.subr.bf16.mxu0 0
  %481 = vmatpush1.bf16.msra.mxu0 0
  %482 = vmatprep.subr.bf16.mxu0 0
  %483 = vmatpush1.bf16.msra.mxu0 0
  %484 = vmatprep.subr.bf16.mxu0 0
  %485 = vmatpush1.bf16.msra.mxu0 0
  %486 = vmatprep.subr.bf16.mxu0 0
  %487 = vmatpush1.bf16.msra.mxu0 0
  %488 = vmatprep.subr.bf16.mxu0 0
  %489 = vmatpush1.bf16.msra.mxu0 0
  %490 = vmatprep.subr.bf16.mxu0 0
  %491 = vmatpush1.bf16.msra.mxu0 0
  %492 = vmatprep.subr.bf16.mxu0 0
  %493 = vmatpush1.bf16.msra.mxu0 0
  %494 = vmatprep.subr.bf16.mxu0 0
  %495 = vmatpush1.bf16.msra.mxu0 0
  %496 = vmatprep.subr.bf16.mxu0 0
  %497 = vmatpush1.bf16.msra.mxu0 0
  %498 = vmatprep.subr.bf16.mxu0 0
  %499 = vmatpush1.bf16.msra.mxu0 0
  %500 = vmatprep.subr.bf16.mxu0 0
  %501 = vmatpush1.bf16.msra.mxu0 0
  %502 = vmatprep.subr.bf16.mxu0 0
  %503 = vmatpush1.bf16.msra.mxu0 0
  %504 = vmatprep.subr.bf16.mxu0 0
  %505 = vmatpush1.bf16.msra.mxu0 0
  %506 = vmatprep.subr.bf16.mxu0 0
  %507 = vmatpush1.bf16.msra.mxu0 0
  %508 = vmatprep.mubr.bf16.mxu0 0
  %509 = vmatmul.mubr.bf16.gmra.mrb[0].mxu0 %v474
  %v510 = vpop.f32.mrb[0].mxu0
  %v511 = vadd.f32 0.0, %v510
  %v512 = vpop.f32.mrb[0].mxu0
  %v513 = vpop.f32.mrb[0].mxu0
  %v514 = vadd.f32 0.0, %v513
  %v515 = vpop.f32.mrb[0].mxu0
  %516 = vdwg.mxu0
  %v517 = vadd.f32 %v240, %v511
  %v518 = vadd.f32 %v243, %v514
  %v519 = vxor.u32 %v517, 2147483648
  %v520 = vxor.u32 %v518, 2147483648
  %v521 = vmul.f32 %v519, 1.442695
  %v522 = vpow.pop %v521
  %v523 = vmul.f32 %v520, 1.442695
  %v524 = vpow.pop %v523
  %v525 = vadd.f32 %v522, 1.0
  %v526 = vadd.f32 %v524, 1.0
  %v527 = vrcp.pop %v525
  %v528 = vmul.f32 1.0, %v527
  %v529 = vrcp.pop %v526
  %v530 = vmul.f32 1.0, %v529
  %v531 = vtanh.pop %v517
  %v532 = vtanh.pop %v518
  %v533 = vmul.f32 %v528, %v453
  %v534 = vmul.f32 %v530, %v454
  %537 = vrot.lane.b32.xlu0 %v531, 64
  %v538 = vpop.permute.xlu0 %537
  %539 = vrot.lane.b32.xlu0 %v532, 64
  %v540 = vpop.permute.xlu0 %539
  %v543 = vmul.f32 %v528, %v538
  %v544 = vmul.f32 %v530, %v540
  %547 = vrot.lane.b32.xlu0 %v543, 32
  %v548 = vpop.permute.xlu0 %547
  %549 = vrot.lane.b32.xlu0 %v544, 32
  %v550 = vpop.permute.xlu0 %549
  %v553 = vadd.f32 %v533, %v548
  %v554 = vadd.f32 %v534, %v550
  %v555 = vtanh.pop %v553
  %v556 = vtanh.pop %v554
  %559 = vrot.lane.b32.xlu0 %v555, 64
  %v560 = vpop.permute.xlu0 %559
  %561 = vrot.lane.b32.xlu0 %v556, 64
  %v562 = vpop.permute.xlu0 %561
  %v565 = vmul.f32 %v528, %v560
  %v566 = vmul.f32 %v530, %v562
  %v567 = vmul.f32 %v565, %v346
  %v568 = vmul.f32 %v566, %v347
  %v569 = vmax.f32 %v467, %v567
  %v570 = vmax.f32 %v468, %v568
  %v571 = vpack.c.bf16 %v566, %v565
  %573 = vrot.lane.b32.xlu0 %v571, 32
  %v574 = vpop.permute.xlu0 %573
  %v576 = vsel %vm78, %v574, 0
  %578 = vmatprep.subr.bf16.mxu0 0
  %579 = vmatpush1.bf16.msra.mxu0 %v369
  %580 = vmatprep.subr.bf16.mxu0 0
  %581 = vmatpush1.bf16.msra.mxu0 %v370
  %582 = vmatprep.subr.bf16.mxu0 0
  %583 = vmatpush1.bf16.msra.mxu0 0
  %584 = vmatprep.subr.bf16.mxu0 0
  %585 = vmatpush1.bf16.msra.mxu0 0
  %586 = vmatprep.subr.bf16.mxu0 0
  %587 = vmatpush1.bf16.msra.mxu0 0
  %588 = vmatprep.subr.bf16.mxu0 0
  %589 = vmatpush1.bf16.msra.mxu0 0
  %590 = vmatprep.subr.bf16.mxu0 0
  %591 = vmatpush1.bf16.msra.mxu0 0
  %592 = vmatprep.subr.bf16.mxu0 0
  %593 = vmatpush1.bf16.msra.mxu0 0
  %594 = vmatprep.subr.bf16.mxu0 0
  %595 = vmatpush1.bf16.msra.mxu0 0
  %596 = vmatprep.subr.bf16.mxu0 0
  %597 = vmatpush1.bf16.msra.mxu0 0
  %598 = vmatprep.subr.bf16.mxu0 0
  %599 = vmatpush1.bf16.msra.mxu0 0
  %600 = vmatprep.subr.bf16.mxu0 0
  %601 = vmatpush1.bf16.msra.mxu0 0
  %602 = vmatprep.subr.bf16.mxu0 0
  %603 = vmatpush1.bf16.msra.mxu0 0
  %604 = vmatprep.subr.bf16.mxu0 0
  %605 = vmatpush1.bf16.msra.mxu0 0
  %606 = vmatprep.subr.bf16.mxu0 0
  %607 = vmatpush1.bf16.msra.mxu0 0
  %608 = vmatprep.subr.bf16.mxu0 0
  %609 = vmatpush1.bf16.msra.mxu0 0
  %610 = vmatprep.mubr.bf16.mxu0 0
  %611 = vmatmul.mubr.bf16.gmra.mrb[0].mxu0 %v576
  %v612 = vpop.f32.mrb[0].mxu0
  %v613 = vadd.f32 0.0, %v612
  %v614 = vpop.f32.mrb[0].mxu0
  %v615 = vpop.f32.mrb[0].mxu0
  %v616 = vadd.f32 0.0, %v615
  %v617 = vpop.f32.mrb[0].mxu0
  %618 = vdwg.mxu0
  %v619 = vadd.f32 %v248, %v613
  %v620 = vadd.f32 %v251, %v616
  %v621 = vxor.u32 %v619, 2147483648
  %v622 = vxor.u32 %v620, 2147483648
  %v623 = vmul.f32 %v621, 1.442695
  %v624 = vpow.pop %v623
  %v625 = vmul.f32 %v622, 1.442695
  %v626 = vpow.pop %v625
  %v627 = vadd.f32 %v624, 1.0
  %v628 = vadd.f32 %v626, 1.0
  %v629 = vrcp.pop %v627
  %v630 = vmul.f32 1.0, %v629
  %v631 = vrcp.pop %v628
  %v632 = vmul.f32 1.0, %v631
  %v633 = vtanh.pop %v619
  %v634 = vtanh.pop %v620
  %v635 = vmul.f32 %v630, %v553
  %v636 = vmul.f32 %v632, %v554
  %639 = vrot.lane.b32.xlu0 %v633, 64
  %v640 = vpop.permute.xlu0 %639
  %641 = vrot.lane.b32.xlu0 %v634, 64
  %v642 = vpop.permute.xlu0 %641
  %v645 = vmul.f32 %v630, %v640
  %v646 = vmul.f32 %v632, %v642
  %649 = vrot.lane.b32.xlu0 %v645, 32
  %v650 = vpop.permute.xlu0 %649
  %651 = vrot.lane.b32.xlu0 %v646, 32
  %v652 = vpop.permute.xlu0 %651
  %v655 = vadd.f32 %v635, %v650
  %v656 = vadd.f32 %v636, %v652
  %v657 = vtanh.pop %v655
  %v658 = vtanh.pop %v656
  %661 = vrot.lane.b32.xlu0 %v657, 64
  %v662 = vpop.permute.xlu0 %661
  %663 = vrot.lane.b32.xlu0 %v658, 64
  %v664 = vpop.permute.xlu0 %663
  %v667 = vmul.f32 %v630, %v662
  %v668 = vmul.f32 %v632, %v664
  %v669 = vmul.f32 %v667, %v348
  %v670 = vmul.f32 %v668, %v349
  %v671 = vmax.f32 %v569, %v669
  %v672 = vmax.f32 %v570, %v670
  %v673 = vpack.c.bf16 %v668, %v667
  %675 = vrot.lane.b32.xlu0 %v673, 32
  %v676 = vpop.permute.xlu0 %675
  %v678 = vsel %vm78, %v676, 0
  %680 = vmatprep.subr.bf16.mxu0 0
  %681 = vmatpush1.bf16.msra.mxu0 %v369
  %682 = vmatprep.subr.bf16.mxu0 0
  %683 = vmatpush1.bf16.msra.mxu0 %v370
  %684 = vmatprep.subr.bf16.mxu0 0
  %685 = vmatpush1.bf16.msra.mxu0 0
  %686 = vmatprep.subr.bf16.mxu0 0
  %687 = vmatpush1.bf16.msra.mxu0 0
  %688 = vmatprep.subr.bf16.mxu0 0
  %689 = vmatpush1.bf16.msra.mxu0 0
  %690 = vmatprep.subr.bf16.mxu0 0
  %691 = vmatpush1.bf16.msra.mxu0 0
  %692 = vmatprep.subr.bf16.mxu0 0
  %693 = vmatpush1.bf16.msra.mxu0 0
  %694 = vmatprep.subr.bf16.mxu0 0
  %695 = vmatpush1.bf16.msra.mxu0 0
  %696 = vmatprep.subr.bf16.mxu0 0
  %697 = vmatpush1.bf16.msra.mxu0 0
  %698 = vmatprep.subr.bf16.mxu0 0
  %699 = vmatpush1.bf16.msra.mxu0 0
  %700 = vmatprep.subr.bf16.mxu0 0
  %701 = vmatpush1.bf16.msra.mxu0 0
  %702 = vmatprep.subr.bf16.mxu0 0
  %703 = vmatpush1.bf16.msra.mxu0 0
  %704 = vmatprep.subr.bf16.mxu0 0
  %705 = vmatpush1.bf16.msra.mxu0 0
  %706 = vmatprep.subr.bf16.mxu0 0
  %707 = vmatpush1.bf16.msra.mxu0 0
  %708 = vmatprep.subr.bf16.mxu0 0
  %709 = vmatpush1.bf16.msra.mxu0 0
  %710 = vmatprep.subr.bf16.mxu0 0
  %711 = vmatpush1.bf16.msra.mxu0 0
  %712 = vmatprep.mubr.bf16.mxu0 0
  %713 = vmatmul.mubr.bf16.gmra.mrb[0].mxu0 %v678
  %v714 = vpop.f32.mrb[0].mxu0
  %v715 = vadd.f32 0.0, %v714
  %v716 = vpop.f32.mrb[0].mxu0
  %v717 = vpop.f32.mrb[0].mxu0
  %v718 = vadd.f32 0.0, %v717
  %v719 = vpop.f32.mrb[0].mxu0
  %720 = vdwg.mxu0
  %v721 = vadd.f32 %v256, %v715
  %v722 = vadd.f32 %v259, %v718
  %v723 = vxor.u32 %v721, 2147483648
  %v724 = vxor.u32 %v722, 2147483648
  %v725 = vmul.f32 %v723, 1.442695
  %v726 = vpow.pop %v725
  %v727 = vmul.f32 %v724, 1.442695
  %v728 = vpow.pop %v727
  %v729 = vadd.f32 %v726, 1.0
  %v730 = vadd.f32 %v728, 1.0
  %v731 = vrcp.pop %v729
  %v732 = vmul.f32 1.0, %v731
  %v733 = vrcp.pop %v730
  %v734 = vmul.f32 1.0, %v733
  %v735 = vtanh.pop %v721
  %v736 = vtanh.pop %v722
  %v737 = vmul.f32 %v732, %v655
  %v738 = vmul.f32 %v734, %v656
  %741 = vrot.lane.b32.xlu0 %v735, 64
  %v742 = vpop.permute.xlu0 %741
  %743 = vrot.lane.b32.xlu0 %v736, 64
  %v744 = vpop.permute.xlu0 %743
  %v747 = vmul.f32 %v732, %v742
  %v748 = vmul.f32 %v734, %v744
  %751 = vrot.lane.b32.xlu0 %v747, 32
  %v752 = vpop.permute.xlu0 %751
  %753 = vrot.lane.b32.xlu0 %v748, 32
  %v754 = vpop.permute.xlu0 %753
  %v757 = vadd.f32 %v737, %v752
  %v758 = vadd.f32 %v738, %v754
  %v759 = vtanh.pop %v757
  %v760 = vtanh.pop %v758
  %763 = vrot.lane.b32.xlu0 %v759, 64
  %v764 = vpop.permute.xlu0 %763
  %765 = vrot.lane.b32.xlu0 %v760, 64
  %v766 = vpop.permute.xlu0 %765
  %v769 = vmul.f32 %v732, %v764
  %v770 = vmul.f32 %v734, %v766
  %v771 = vmul.f32 %v769, %v350
  %v772 = vmul.f32 %v770, %v351
  %v773 = vmax.f32 %v671, %v771
  %v774 = vmax.f32 %v672, %v772
  %v775 = vpack.c.bf16 %v770, %v769
  %777 = vrot.lane.b32.xlu0 %v775, 32
  %v778 = vpop.permute.xlu0 %777
  %v780 = vsel %vm78, %v778, 0
  %782 = vmatprep.subr.bf16.mxu0 0
  %783 = vmatpush1.bf16.msra.mxu0 %v369
  %784 = vmatprep.subr.bf16.mxu0 0
  %785 = vmatpush1.bf16.msra.mxu0 %v370
  %786 = vmatprep.subr.bf16.mxu0 0
  %787 = vmatpush1.bf16.msra.mxu0 0
  %788 = vmatprep.subr.bf16.mxu0 0
  %789 = vmatpush1.bf16.msra.mxu0 0
  %790 = vmatprep.subr.bf16.mxu0 0
  %791 = vmatpush1.bf16.msra.mxu0 0
  %792 = vmatprep.subr.bf16.mxu0 0
  %793 = vmatpush1.bf16.msra.mxu0 0
  %794 = vmatprep.subr.bf16.mxu0 0
  %795 = vmatpush1.bf16.msra.mxu0 0
  %796 = vmatprep.subr.bf16.mxu0 0
  %797 = vmatpush1.bf16.msra.mxu0 0
  %798 = vmatprep.subr.bf16.mxu0 0
  %799 = vmatpush1.bf16.msra.mxu0 0
  %800 = vmatprep.subr.bf16.mxu0 0
  %801 = vmatpush1.bf16.msra.mxu0 0
  %802 = vmatprep.subr.bf16.mxu0 0
  %803 = vmatpush1.bf16.msra.mxu0 0
  %804 = vmatprep.subr.bf16.mxu0 0
  %805 = vmatpush1.bf16.msra.mxu0 0
  %806 = vmatprep.subr.bf16.mxu0 0
  %807 = vmatpush1.bf16.msra.mxu0 0
  %808 = vmatprep.subr.bf16.mxu0 0
  %809 = vmatpush1.bf16.msra.mxu0 0
  %810 = vmatprep.subr.bf16.mxu0 0
  %811 = vmatpush1.bf16.msra.mxu0 0
  %812 = vmatprep.subr.bf16.mxu0 0
  %813 = vmatpush1.bf16.msra.mxu0 0
  %814 = vmatprep.mubr.bf16.mxu0 0
  %815 = vmatmul.mubr.bf16.gmra.mrb[0].mxu0 %v780
  %v816 = vpop.f32.mrb[0].mxu0
  %v817 = vadd.f32 0.0, %v816
  %v818 = vpop.f32.mrb[0].mxu0
  %v819 = vpop.f32.mrb[0].mxu0
  %v820 = vadd.f32 0.0, %v819
  %v821 = vpop.f32.mrb[0].mxu0
  %822 = vdwg.mxu0
  %v823 = vadd.f32 %v264, %v817
  %v824 = vadd.f32 %v267, %v820
  %v825 = vxor.u32 %v823, 2147483648
  %v826 = vxor.u32 %v824, 2147483648
  %v827 = vmul.f32 %v825, 1.442695
  %v828 = vpow.pop %v827
  %v829 = vmul.f32 %v826, 1.442695
  %v830 = vpow.pop %v829
  %v831 = vadd.f32 %v828, 1.0
  %v832 = vadd.f32 %v830, 1.0
  %v833 = vrcp.pop %v831
  %v834 = vmul.f32 1.0, %v833
  %v835 = vrcp.pop %v832
  %v836 = vmul.f32 1.0, %v835
  %v837 = vtanh.pop %v823
  %v838 = vtanh.pop %v824
  %v839 = vmul.f32 %v834, %v757
  %v840 = vmul.f32 %v836, %v758
  %843 = vrot.lane.b32.xlu0 %v837, 64
  %v844 = vpop.permute.xlu0 %843
  %845 = vrot.lane.b32.xlu0 %v838, 64
  %v846 = vpop.permute.xlu0 %845
  %v849 = vmul.f32 %v834, %v844
  %v850 = vmul.f32 %v836, %v846
  %853 = vrot.lane.b32.xlu0 %v849, 32
  %v854 = vpop.permute.xlu0 %853
  %855 = vrot.lane.b32.xlu0 %v850, 32
  %v856 = vpop.permute.xlu0 %855
  %v859 = vadd.f32 %v839, %v854
  %v860 = vadd.f32 %v840, %v856
  %v861 = vtanh.pop %v859
  %v862 = vtanh.pop %v860
  %865 = vrot.lane.b32.xlu0 %v861, 64
  %v866 = vpop.permute.xlu0 %865
  %867 = vrot.lane.b32.xlu0 %v862, 64
  %v868 = vpop.permute.xlu0 %867
  %v871 = vmul.f32 %v834, %v866
  %v872 = vmul.f32 %v836, %v868
  %v873 = vmul.f32 %v871, %v352
  %v874 = vmul.f32 %v872, %v353
  %v875 = vmax.f32 %v773, %v873
  %v876 = vmax.f32 %v774, %v874
  %v877 = vpack.c.bf16 %v872, %v871
  %879 = vrot.lane.b32.xlu0 %v877, 32
  %v880 = vpop.permute.xlu0 %879
  %v882 = vsel %vm78, %v880, 0
  %884 = vmatprep.subr.bf16.mxu0 0
  %885 = vmatpush1.bf16.msra.mxu0 %v369
  %886 = vmatprep.subr.bf16.mxu0 0
  %887 = vmatpush1.bf16.msra.mxu0 %v370
  %888 = vmatprep.subr.bf16.mxu0 0
  %889 = vmatpush1.bf16.msra.mxu0 0
  %890 = vmatprep.subr.bf16.mxu0 0
  %891 = vmatpush1.bf16.msra.mxu0 0
  %892 = vmatprep.subr.bf16.mxu0 0
  %893 = vmatpush1.bf16.msra.mxu0 0
  %894 = vmatprep.subr.bf16.mxu0 0
  %895 = vmatpush1.bf16.msra.mxu0 0
  %896 = vmatprep.subr.bf16.mxu0 0
  %897 = vmatpush1.bf16.msra.mxu0 0
  %898 = vmatprep.subr.bf16.mxu0 0
  %899 = vmatpush1.bf16.msra.mxu0 0
  %900 = vmatprep.subr.bf16.mxu0 0
  %901 = vmatpush1.bf16.msra.mxu0 0
  %902 = vmatprep.subr.bf16.mxu0 0
  %903 = vmatpush1.bf16.msra.mxu0 0
  %904 = vmatprep.subr.bf16.mxu0 0
  %905 = vmatpush1.bf16.msra.mxu0 0
  %906 = vmatprep.subr.bf16.mxu0 0
  %907 = vmatpush1.bf16.msra.mxu0 0
  %908 = vmatprep.subr.bf16.mxu0 0
  %909 = vmatpush1.bf16.msra.mxu0 0
  %910 = vmatprep.subr.bf16.mxu0 0
  %911 = vmatpush1.bf16.msra.mxu0 0
  %912 = vmatprep.subr.bf16.mxu0 0
  %913 = vmatpush1.bf16.msra.mxu0 0
  %914 = vmatprep.subr.bf16.mxu0 0
  %915 = vmatpush1.bf16.msra.mxu0 0
  %916 = vmatprep.mubr.bf16.mxu0 0
  %917 = vmatmul.mubr.bf16.gmra.mrb[0].mxu0 %v882
  %v918 = vpop.f32.mrb[0].mxu0
  %v919 = vadd.f32 0.0, %v918
  %v920 = vpop.f32.mrb[0].mxu0
  %v921 = vpop.f32.mrb[0].mxu0
  %v922 = vadd.f32 0.0, %v921
  %v923 = vpop.f32.mrb[0].mxu0
  %924 = vdwg.mxu0
  %v925 = vadd.f32 %v272, %v919
  %v926 = vadd.f32 %v275, %v922
  %v927 = vxor.u32 %v925, 2147483648
  %v928 = vxor.u32 %v926, 2147483648
  %v929 = vmul.f32 %v927, 1.442695
  %v930 = vpow.pop %v929
  %v931 = vmul.f32 %v928, 1.442695
  %v932 = vpow.pop %v931
  %v933 = vadd.f32 %v930, 1.0
  %v934 = vadd.f32 %v932, 1.0
  %v935 = vrcp.pop %v933
  %v936 = vmul.f32 1.0, %v935
  %v937 = vrcp.pop %v934
  %v938 = vmul.f32 1.0, %v937
  %v939 = vtanh.pop %v925
  %v940 = vtanh.pop %v926
  %v941 = vmul.f32 %v936, %v859
  %v942 = vmul.f32 %v938, %v860
  %945 = vrot.lane.b32.xlu0 %v939, 64
  %v946 = vpop.permute.xlu0 %945
  %947 = vrot.lane.b32.xlu0 %v940, 64
  %v948 = vpop.permute.xlu0 %947
  %v951 = vmul.f32 %v936, %v946
  %v952 = vmul.f32 %v938, %v948
  %955 = vrot.lane.b32.xlu0 %v951, 32
  %v956 = vpop.permute.xlu0 %955
  %957 = vrot.lane.b32.xlu0 %v952, 32
  %v958 = vpop.permute.xlu0 %957
  %v961 = vadd.f32 %v941, %v956
  %v962 = vadd.f32 %v942, %v958
  %v963 = vtanh.pop %v961
  %v964 = vtanh.pop %v962
  %967 = vrot.lane.b32.xlu0 %v963, 64
  %v968 = vpop.permute.xlu0 %967
  %969 = vrot.lane.b32.xlu0 %v964, 64
  %v970 = vpop.permute.xlu0 %969
  %v973 = vmul.f32 %v936, %v968
  %v974 = vmul.f32 %v938, %v970
  %v975 = vmul.f32 %v973, %v354
  %v976 = vmul.f32 %v974, %v355
  %v977 = vmax.f32 %v875, %v975
  %v978 = vmax.f32 %v876, %v976
  %v979 = vpack.c.bf16 %v974, %v973
  %981 = vrot.lane.b32.xlu0 %v979, 32
  %v982 = vpop.permute.xlu0 %981
  %v984 = vsel %vm78, %v982, 0
  %986 = vmatprep.subr.bf16.mxu0 0
  %987 = vmatpush1.bf16.msra.mxu0 %v369
  %988 = vmatprep.subr.bf16.mxu0 0
  %989 = vmatpush1.bf16.msra.mxu0 %v370
  %990 = vmatprep.subr.bf16.mxu0 0
  %991 = vmatpush1.bf16.msra.mxu0 0
  %992 = vmatprep.subr.bf16.mxu0 0
  %993 = vmatpush1.bf16.msra.mxu0 0
  %994 = vmatprep.subr.bf16.mxu0 0
  %995 = vmatpush1.bf16.msra.mxu0 0
  %996 = vmatprep.subr.bf16.mxu0 0
  %997 = vmatpush1.bf16.msra.mxu0 0
  %998 = vmatprep.subr.bf16.mxu0 0
  %999 = vmatpush1.bf16.msra.mxu0 0
  %1000 = vmatprep.subr.bf16.mxu0 0
  %1001 = vmatpush1.bf16.msra.mxu0 0
  %1002 = vmatprep.subr.bf16.mxu0 0
  %1003 = vmatpush1.bf16.msra.mxu0 0
  %1004 = vmatprep.subr.bf16.mxu0 0
  %1005 = vmatpush1.bf16.msra.mxu0 0
  %1006 = vmatprep.subr.bf16.mxu0 0
  %1007 = vmatpush1.bf16.msra.mxu0 0
  %1008 = vmatprep.subr.bf16.mxu0 0
  %1009 = vmatpush1.bf16.msra.mxu0 0
  %1010 = vmatprep.subr.bf16.mxu0 0
  %1011 = vmatpush1.bf16.msra.mxu0 0
  %1012 = vmatprep.subr.bf16.mxu0 0
  %1013 = vmatpush1.bf16.msra.mxu0 0
  %1014 = vmatprep.subr.bf16.mxu0 0
  %1015 = vmatpush1.bf16.msra.mxu0 0
  %1016 = vmatprep.subr.bf16.mxu0 0
  %1017 = vmatpush1.bf16.msra.mxu0 0
  %1018 = vmatprep.mubr.bf16.mxu0 0
  %1019 = vmatmul.mubr.bf16.gmra.mrb[0].mxu0 %v984
  %v1020 = vpop.f32.mrb[0].mxu0
  %v1021 = vadd.f32 0.0, %v1020
  %v1022 = vpop.f32.mrb[0].mxu0
  %v1023 = vpop.f32.mrb[0].mxu0
  %v1024 = vadd.f32 0.0, %v1023
  %v1025 = vpop.f32.mrb[0].mxu0
  %1026 = vdwg.mxu0
  %v1027 = vadd.f32 %v280, %v1021
  %v1028 = vadd.f32 %v283, %v1024
  %v1029 = vxor.u32 %v1027, 2147483648
  %v1030 = vxor.u32 %v1028, 2147483648
  %v1031 = vmul.f32 %v1029, 1.442695
  %v1032 = vpow.pop %v1031
  %v1033 = vmul.f32 %v1030, 1.442695
  %v1034 = vpow.pop %v1033
  %v1035 = vadd.f32 %v1032, 1.0
  %v1036 = vadd.f32 %v1034, 1.0
  %v1037 = vrcp.pop %v1035
  %v1038 = vmul.f32 1.0, %v1037
  %v1039 = vrcp.pop %v1036
  %v1040 = vmul.f32 1.0, %v1039
  %v1041 = vtanh.pop %v1027
  %v1042 = vtanh.pop %v1028
  %v1043 = vmul.f32 %v1038, %v961
  %v1044 = vmul.f32 %v1040, %v962
  %1047 = vrot.lane.b32.xlu0 %v1041, 64
  %v1048 = vpop.permute.xlu0 %1047
  %1049 = vrot.lane.b32.xlu0 %v1042, 64
  %v1050 = vpop.permute.xlu0 %1049
  %v1053 = vmul.f32 %v1038, %v1048
  %v1054 = vmul.f32 %v1040, %v1050
  %1057 = vrot.lane.b32.xlu0 %v1053, 32
  %v1058 = vpop.permute.xlu0 %1057
  %1059 = vrot.lane.b32.xlu0 %v1054, 32
  %v1060 = vpop.permute.xlu0 %1059
  %v1063 = vadd.f32 %v1043, %v1058
  %v1064 = vadd.f32 %v1044, %v1060
  %v1065 = vtanh.pop %v1063
  %v1066 = vtanh.pop %v1064
  %1069 = vrot.lane.b32.xlu0 %v1065, 64
  %v1070 = vpop.permute.xlu0 %1069
  %1071 = vrot.lane.b32.xlu0 %v1066, 64
  %v1072 = vpop.permute.xlu0 %1071
  %v1075 = vmul.f32 %v1038, %v1070
  %v1076 = vmul.f32 %v1040, %v1072
  %v1077 = vmul.f32 %v1075, %v356
  %v1078 = vmul.f32 %v1076, %v357
  %v1079 = vmax.f32 %v977, %v1077
  %v1080 = vmax.f32 %v978, %v1078
  %v1081 = vpack.c.bf16 %v1076, %v1075
  %1083 = vrot.lane.b32.xlu0 %v1081, 32
  %v1084 = vpop.permute.xlu0 %1083
  %v1086 = vsel %vm78, %v1084, 0
  %1088 = vmatprep.subr.bf16.mxu0 0
  %1089 = vmatpush1.bf16.msra.mxu0 %v369
  %1090 = vmatprep.subr.bf16.mxu0 0
  %1091 = vmatpush1.bf16.msra.mxu0 %v370
  %1092 = vmatprep.subr.bf16.mxu0 0
  %1093 = vmatpush1.bf16.msra.mxu0 0
  %1094 = vmatprep.subr.bf16.mxu0 0
  %1095 = vmatpush1.bf16.msra.mxu0 0
  %1096 = vmatprep.subr.bf16.mxu0 0
  %1097 = vmatpush1.bf16.msra.mxu0 0
  %1098 = vmatprep.subr.bf16.mxu0 0
  %1099 = vmatpush1.bf16.msra.mxu0 0
  %1100 = vmatprep.subr.bf16.mxu0 0
  %1101 = vmatpush1.bf16.msra.mxu0 0
  %1102 = vmatprep.subr.bf16.mxu0 0
  %1103 = vmatpush1.bf16.msra.mxu0 0
  %1104 = vmatprep.subr.bf16.mxu0 0
  %1105 = vmatpush1.bf16.msra.mxu0 0
  %1106 = vmatprep.subr.bf16.mxu0 0
  %1107 = vmatpush1.bf16.msra.mxu0 0
  %1108 = vmatprep.subr.bf16.mxu0 0
  %1109 = vmatpush1.bf16.msra.mxu0 0
  %1110 = vmatprep.subr.bf16.mxu0 0
  %1111 = vmatpush1.bf16.msra.mxu0 0
  %1112 = vmatprep.subr.bf16.mxu0 0
  %1113 = vmatpush1.bf16.msra.mxu0 0
  %1114 = vmatprep.subr.bf16.mxu0 0
  %1115 = vmatpush1.bf16.msra.mxu0 0
  %1116 = vmatprep.subr.bf16.mxu0 0
  %1117 = vmatpush1.bf16.msra.mxu0 0
  %1118 = vmatprep.subr.bf16.mxu0 0
  %1119 = vmatpush1.bf16.msra.mxu0 0
  %1120 = vmatprep.mubr.bf16.mxu0 0
  %1121 = vmatmul.mubr.bf16.gmra.mrb[0].mxu0 %v1086
  %v1122 = vpop.f32.mrb[0].mxu0
  %v1123 = vadd.f32 0.0, %v1122
  %v1124 = vpop.f32.mrb[0].mxu0
  %v1125 = vpop.f32.mrb[0].mxu0
  %v1126 = vadd.f32 0.0, %v1125
  %v1127 = vpop.f32.mrb[0].mxu0
  %1128 = vdwg.mxu0
  %v1129 = vadd.f32 %v288, %v1123
  %v1130 = vadd.f32 %v291, %v1126
  %v1131 = vxor.u32 %v1129, 2147483648
  %v1132 = vxor.u32 %v1130, 2147483648
  %v1133 = vmul.f32 %v1131, 1.442695
  %v1134 = vpow.pop %v1133
  %v1135 = vmul.f32 %v1132, 1.442695
  %v1136 = vpow.pop %v1135
  %v1137 = vadd.f32 %v1134, 1.0
  %v1138 = vadd.f32 %v1136, 1.0
  %v1139 = vrcp.pop %v1137
  %v1140 = vmul.f32 1.0, %v1139
  %v1141 = vrcp.pop %v1138
  %v1142 = vmul.f32 1.0, %v1141
  %v1143 = vtanh.pop %v1129
  %v1144 = vtanh.pop %v1130
  %v1145 = vmul.f32 %v1140, %v1063
  %v1146 = vmul.f32 %v1142, %v1064
  %1149 = vrot.lane.b32.xlu0 %v1143, 64
  %v1150 = vpop.permute.xlu0 %1149
  %1151 = vrot.lane.b32.xlu0 %v1144, 64
  %v1152 = vpop.permute.xlu0 %1151
  %v1155 = vmul.f32 %v1140, %v1150
  %v1156 = vmul.f32 %v1142, %v1152
  %1159 = vrot.lane.b32.xlu0 %v1155, 32
  %v1160 = vpop.permute.xlu0 %1159
  %1161 = vrot.lane.b32.xlu0 %v1156, 32
  %v1162 = vpop.permute.xlu0 %1161
  %v1165 = vadd.f32 %v1145, %v1160
  %v1166 = vadd.f32 %v1146, %v1162
  %v1167 = vtanh.pop %v1165
  %v1168 = vtanh.pop %v1166
  %1171 = vrot.lane.b32.xlu0 %v1167, 64
  %v1172 = vpop.permute.xlu0 %1171
  %1173 = vrot.lane.b32.xlu0 %v1168, 64
  %v1174 = vpop.permute.xlu0 %1173
  %v1177 = vmul.f32 %v1140, %v1172
  %v1178 = vmul.f32 %v1142, %v1174
  %v1179 = vmul.f32 %v1177, %v358
  %v1180 = vmul.f32 %v1178, %v359
  %v1181 = vmax.f32 %v1079, %v1179
  %v1182 = vmax.f32 %v1080, %v1180
  %1185 = vrot.lane.b32.xlu0 %v1181, 32
  %v1186 = vpop.permute.xlu0 %1185
  %1187 = vrot.lane.b32.xlu0 %v1182, 32
  %v1188 = vpop.permute.xlu0 %1187
  %v1191 = vmul.f32 %v123, %v1186
  %v1192 = vmul.f32 %v124, %v1188
  %v1193 = vpack.c.bf16 %v43, %v41
  %v1194 = vpack.c.bf16 %v1192, %v1191
  %v1199 = vunpack.c.l.b16 %v37
  %v1200 = vunpack.c.l.b16 %v38
  %v1201 = vunpack.c.l.b16 %v39
  %v1202 = vunpack.c.l.b16 %v40
  %v1203 = vpack.c.b16 %v1200, %v1199
  %v1204 = vpack.c.b16 %v1202, %v1201
  %v1208 = vsel %vm78, %v1194, 0
  %1210 = vmatprep.subr.bf16.mxu0 0
  %1211 = vmatpush1.bf16.msra.mxu0 %v1203
  %1212 = vmatprep.subr.bf16.mxu0 0
  %1213 = vmatpush1.bf16.msra.mxu0 %v1204
  %1214 = vmatprep.subr.bf16.mxu0 0
  %1215 = vmatpush1.bf16.msra.mxu0 0
  %1216 = vmatprep.subr.bf16.mxu0 0
  %1217 = vmatpush1.bf16.msra.mxu0 0
  %1218 = vmatprep.subr.bf16.mxu0 0
  %1219 = vmatpush1.bf16.msra.mxu0 0
  %1220 = vmatprep.subr.bf16.mxu0 0
  %1221 = vmatpush1.bf16.msra.mxu0 0
  %1222 = vmatprep.subr.bf16.mxu0 0
  %1223 = vmatpush1.bf16.msra.mxu0 0
  %1224 = vmatprep.subr.bf16.mxu0 0
  %1225 = vmatpush1.bf16.msra.mxu0 0
  %1226 = vmatprep.subr.bf16.mxu0 0
  %1227 = vmatpush1.bf16.msra.mxu0 0
  %1228 = vmatprep.subr.bf16.mxu0 0
  %1229 = vmatpush1.bf16.msra.mxu0 0
  %1230 = vmatprep.subr.bf16.mxu0 0
  %1231 = vmatpush1.bf16.msra.mxu0 0
  %1232 = vmatprep.subr.bf16.mxu0 0
  %1233 = vmatpush1.bf16.msra.mxu0 0
  %1234 = vmatprep.subr.bf16.mxu0 0
  %1235 = vmatpush1.bf16.msra.mxu0 0
  %1236 = vmatprep.subr.bf16.mxu0 0
  %1237 = vmatpush1.bf16.msra.mxu0 0
  %1238 = vmatprep.subr.bf16.mxu0 0
  %1239 = vmatpush1.bf16.msra.mxu0 0
  %1240 = vmatprep.subr.bf16.mxu0 0
  %1241 = vmatpush1.bf16.msra.mxu0 0
  %1242 = vmatprep.mubr.bf16.mxu0 0
  %1243 = vmatmul.mubr.bf16.gmra.mrb[0].mxu0 %v1208
  %v1244 = vpop.f32.mrb[0].mxu0
  %v1245 = vadd.f32 0.0, %v1244
  %v1246 = vpop.f32.mrb[0].mxu0
  %v1247 = vpop.f32.mrb[0].mxu0
  %v1248 = vadd.f32 0.0, %v1247
  %v1249 = vpop.f32.mrb[0].mxu0
  %1250 = vdwg.mxu0
  %v1259 = vunpack.c.l.b16 %v29
  %v1260 = vunpack.c.l.b16 %v30
  %v1261 = vunpack.c.l.b16 %v31
  %v1262 = vunpack.c.l.b16 %v32
  %v1263 = vunpack.c.l.b16 %v33
  %v1264 = vunpack.c.l.b16 %v34
  %v1265 = vunpack.c.l.b16 %v35
  %v1266 = vunpack.c.l.b16 %v36
  %v1267 = vpack.c.b16 %v1260, %v1259
  %v1268 = vpack.c.b16 %v1262, %v1261
  %v1269 = vpack.c.b16 %v1264, %v1263
  %v1270 = vpack.c.b16 %v1266, %v1265
  %vm1275 = vcmask 523264
  %v1277 = vsel %vm1275, %v1193, 0
  %1279 = vmatprep.subr.bf16.mxu0 0
  %1280 = vmatpush1.bf16.msra.mxu0 %v1267
  %1281 = vmatprep.subr.bf16.mxu0 0
  %1282 = vmatpush1.bf16.msra.mxu0 %v1268
  %1283 = vmatprep.subr.bf16.mxu0 0
  %1284 = vmatpush1.bf16.msra.mxu0 %v1269
  %1285 = vmatprep.subr.bf16.mxu0 0
  %1286 = vmatpush1.bf16.msra.mxu0 %v1270
  %1287 = vmatprep.subr.bf16.mxu0 0
  %1288 = vmatpush1.bf16.msra.mxu0 0
  %1289 = vmatprep.subr.bf16.mxu0 0
  %1290 = vmatpush1.bf16.msra.mxu0 0
  %1291 = vmatprep.subr.bf16.mxu0 0
  %1292 = vmatpush1.bf16.msra.mxu0 0
  %1293 = vmatprep.subr.bf16.mxu0 0
  %1294 = vmatpush1.bf16.msra.mxu0 0
  %1295 = vmatprep.subr.bf16.mxu0 0
  %1296 = vmatpush1.bf16.msra.mxu0 0
  %1297 = vmatprep.subr.bf16.mxu0 0
  %1298 = vmatpush1.bf16.msra.mxu0 0
  %1299 = vmatprep.subr.bf16.mxu0 0
  %1300 = vmatpush1.bf16.msra.mxu0 0
  %1301 = vmatprep.subr.bf16.mxu0 0
  %1302 = vmatpush1.bf16.msra.mxu0 0
  %1303 = vmatprep.subr.bf16.mxu0 0
  %1304 = vmatpush1.bf16.msra.mxu0 0
  %1305 = vmatprep.subr.bf16.mxu0 0
  %1306 = vmatpush1.bf16.msra.mxu0 0
  %1307 = vmatprep.subr.bf16.mxu0 0
  %1308 = vmatpush1.bf16.msra.mxu0 0
  %1309 = vmatprep.subr.bf16.mxu0 0
  %1310 = vmatpush1.bf16.msra.mxu0 0
  %1311 = vmatprep.mubr.bf16.mxu0 0
  %1312 = vmatmul.mubr.bf16.gmra.mrb[0].mxu0 %v1277
  %v1313 = vpop.f32.mrb[0].mxu0
  %v1314 = vadd.f32 %v1245, %v1313
  %v1315 = vpop.f32.mrb[0].mxu0
  %v1316 = vpop.f32.mrb[0].mxu0
  %v1317 = vadd.f32 %v1248, %v1316
  %v1318 = vpop.f32.mrb[0].mxu0
  %1319 = vdwg.mxu0
  %1322 = vrot.lane.b32.xlu0 %v41, 64
  %v1323 = vpop.permute.xlu0 %1322
  %1324 = vrot.lane.b32.xlu0 %v43, 64
  %v1325 = vpop.permute.xlu0 %1324
  %v1328 = vmul.f32 %v1314, %v1323
  %v1329 = vmul.f32 %v1317, %v1325
  %v1330 = vsel %vm1275, %v1328, 0.0
  %1331 = vadd.xlane.f32.xlu0 %v1330
  %v1332 = vpop.xlane.xlu0 %1331
  %v1333 = vsel %vm1275, %v1329, 0.0
  %1334 = vadd.xlane.f32.xlu0 %v1333
  %v1335 = vpop.xlane.xlu0 %1334
  %v1336 = vadd.f32 %v1332, %v42
  %v1337 = vadd.f32 %v1335, %v44
  %1340 = vrot.lane.b32.xlu0 %v1336, 63
  %v1341 = vpop.permute.xlu0 %1340
  %1342 = vrot.lane.b32.xlu0 %v1337, 63
  %v1343 = vpop.permute.xlu0 %1342
  %vm1346 = vcmask 7168
  %1347 = vst.msk [vmem:[%s3] sm:$0xff] %vm1346, %v1341
  %1348 = vst.msk [vmem:[%s3 + $0x8] sm:$0xff] %vm1346, %v1343
  // Predicated region
  $region14: #{expan_match_sequence_forward.1} parent=0 // pred_check
    _
  $region15: #{expan_match_sequence_forward.1} parent=0 // pred_check_branch
    %1350 = sbr.rel (0) target = $region17
  $region16: #{expan_match_sequence_forward.1} parent=0 // pred_region
    _
  $region17: #{expan_match_sequence_forward.1} parent=0 // pred_fallthru
    _
  // Predicated region
  $region18: #{expan_match_sequence_forward.1} parent=0 // pred_check
    _
  $region19: #{expan_match_sequence_forward.1} parent=0 // pred_check_branch
    %1352 = sbr.rel (0) target = $region21
  $region20: #{expan_match_sequence_forward.1} parent=0 // pred_region
    _
  $region21: #{expan_match_sequence_forward.1} parent=0 // pred_fallthru
    _

</llo_original>
